<compile_context>
chip_gen: v6e
topology: v6e:2x2x1
jax: 0.10.0
libtpu: 0.0.40
codegen_flags: <defaults>
</compile_context>

<pallas_src>
import functools

import jax
import jax.numpy as jnp
from jax.experimental import pallas as pl
from jax.experimental.pallas import tpu as pltpu

LANE = 128
SUBLANE = 8


def _round_up(n, m):
    return ((n + m - 1) // m) * m


def _pick_tb(B):
    """Batch tile selection (sweepable)."""
    if B < 256:
        # Small batch: single 8-aligned tile.
        return max(SUBLANE, _round_up(B, SUBLANE))
    # At least two tiles so 2-TC chips (v7x) can shard the parallel batch axis;
    # cap at 512 (mem-bound kernels reach ~85%+ of HBM roofline at 512-wide tiles).
    return min(512, _round_up(pl.cdiv(B, 2), SUBLANE))


def mlp_kernel(x_ref, w1_ref, b1_ref, w2_ref, b2_ref, w3_ref, b3_ref,
               wc_ref, bc_ref, o_ref):
    # Layer 1: Linear(784 -> 512) + ReLU   (Dropout = identity in eval mode).
    # x_ref is already bf16 -> straight into the MXU, f32 accumulation.
    h = jnp.dot(x_ref[...], w1_ref[...], preferred_element_type=jnp.float32)
    h = jnp.maximum(h + b1_ref[...], 0.0)
    # Layer 2: Linear(512 -> 256) + ReLU
    h = jnp.dot(h.astype(jnp.bfloat16), w2_ref[...],
                preferred_element_type=jnp.float32)
    h = jnp.maximum(h + b2_ref[...], 0.0)
    # Layer 3: Linear(256 -> 128) + ReLU
    h = jnp.dot(h.astype(jnp.bfloat16), w3_ref[...],
                preferred_element_type=jnp.float32)
    h = jnp.maximum(h + b3_ref[...], 0.0)
    # Classifier: Linear(128 -> 128-lane-padded 10); padded cols are zero.
    out = jnp.dot(h.astype(jnp.bfloat16), wc_ref[...],
                  preferred_element_type=jnp.float32) + bc_ref[...]
    o_ref[...] = out.astype(o_ref.dtype)


def prepare_params(params, num_classes=10):
    """One-time weight prep (hoisted out of the per-call path): bf16 cast +
    lane-padding of the classifier columns to 128."""
    nc_pad = _round_up(num_classes, LANE)
    w1 = params["w1"].astype(jnp.bfloat16)                      # (784, 512), unpadded
    w2 = params["w2"].astype(jnp.bfloat16)                      # (512, 256)
    w3 = params["w3"].astype(jnp.bfloat16)                      # (256, 128)
    wc = jnp.pad(params["wc"],
                 ((0, 0), (0, nc_pad - num_classes))).astype(jnp.bfloat16)
    b1 = params["b1"].astype(jnp.float32)
    b2 = params["b2"].astype(jnp.float32)
    b3 = params["b3"].astype(jnp.float32)
    bc = jnp.pad(params["bc"],
                 ((0, 0), (0, nc_pad - num_classes))).astype(jnp.float32)
    return (w1, b1, w2, b2, w3, b3, wc, bc)


@functools.partial(jax.jit, static_argnames=("num_classes",))
def custom_model_forward(x, weights, num_classes=10):
    """x: [B, 784] (bf16 preferred; cast if not). weights: prepare_params(...).
    Returns [B, num_classes] float32 logits."""
    B, D_in = x.shape
    if x.dtype != jnp.bfloat16:
        x = x.astype(jnp.bfloat16)   # ideally the producer already emits bf16

    nc_pad = weights[-1].shape[-1]   # lane-padded classifier width (128)
    TB = _pick_tb(B)
    grid = (pl.cdiv(B, TB),)

    def const_spec(a):
        # Whole array in one VMEM block; constant block index across the batch
        # grid => DMA'd once, stays resident.
        return pl.BlockSpec(a.shape, lambda i: (0, 0))

    out_padded = pl.pallas_call(
        mlp_kernel,
        out_shape=jax.ShapeDtypeStruct((B, nc_pad), jnp.float32),
        grid=grid,
        in_specs=[pl.BlockSpec((TB, D_in), lambda i: (i, 0))]
                 + [const_spec(a) for a in weights],
        out_specs=pl.BlockSpec((TB, nc_pad), lambda i: (i, 0)),
        compiler_params=pltpu.CompilerParams(
            dimension_semantics=("parallel",),
            vmem_limit_bytes=16 << 20,
        ),
    )(x, *weights)

    return out_padded[:, :num_classes]


def init_params(key, input_dim=784, hidden_dims=(512, 256, 128), num_classes=10):
    """Deterministic init mimicking nn.Linear default: U(-1/sqrt(fan_in), 1/sqrt(fan_in))."""
    dims = [input_dim, *hidden_dims, num_classes]
    names = ["1", "2", "3", "c"]
    params = {}
    for name, (din, dout) in zip(names, zip(dims[:-1], dims[1:])):
        key, kw, kb = jax.random.split(key, 3)
        bound = 1.0 / (din ** 0.5)
        params[f"w{name}"] = jax.random.uniform(
            kw, (din, dout), jnp.float32, -bound, bound)
        params[f"b{name}"] = jax.random.uniform(
            kb, (1, dout), jnp.float32, -bound, bound)
    return params


if __name__ == "__main__":
    key = jax.random.PRNGKey(0)
    key, kx, kp = jax.random.split(key, 3)

    B, INPUT_DIM, NUM_CLASSES = 8, 784, 10
    x = jax.random.normal(kx, (B, INPUT_DIM), dtype=jnp.float32)
    params = init_params(kp, input_dim=INPUT_DIM, num_classes=NUM_CLASSES)

    # One-time weight prep (hoisted out of the per-call path).
    weights = prepare_params(params, num_classes=NUM_CLASSES)

    # Producer-side bf16 cast of the input stream.
    x_bf16 = x.astype(jnp.bfloat16)

    out = custom_model_forward(x_bf16, weights, num_classes=NUM_CLASSES)
    out = jax.block_until_ready(out)

    # Reference check in plain JAX (f32 math, same params); bf16 input/weights
    # in the kernel => looser tolerance.
    h = x
    for n in ["1", "2", "3"]:
        h = jnp.maximum(h @ params[f"w{n}"] + params[f"b{n}"], 0.0)
    ref = h @ params["wc"] + params["bc"]
    assert out.shape == (B, NUM_CLASSES)
    assert jnp.allclose(out, ref, atol=5e-2, rtol=5e-2), (
        float(jnp.max(jnp.abs(out - ref))))

    print("KERNEL_OK")
</pallas_src>

<mosaic_0001>
module attributes {stable_mosaic.version = 11 : i64} {
  func.func @mlp_kernel(%arg0: i32, %arg1: memref<8x784xbf16, #tpu.memory_space<vmem>>, %arg2: memref<784x512xbf16, #tpu.memory_space<vmem>>, %arg3: memref<1x512xf32, #tpu.memory_space<vmem>>, %arg4: memref<512x256xbf16, #tpu.memory_space<vmem>>, %arg5: memref<1x256xf32, #tpu.memory_space<vmem>>, %arg6: memref<256x128xbf16, #tpu.memory_space<vmem>>, %arg7: memref<1x128xf32, #tpu.memory_space<vmem>>, %arg8: memref<128x128xbf16, #tpu.memory_space<vmem>>, %arg9: memref<1x128xf32, #tpu.memory_space<vmem>>, %arg10: memref<8x128xf32, #tpu.memory_space<vmem>>) attributes {dimension_semantics = [#tpu.dimension_semantics<parallel>], iteration_bounds = array<i64: 1>, scalar_prefetch = 0 : i64, scratch_operands = 0 : i64, tpu.core_type = #tpu.core_type<tc>, window_params = [{transform_indices = @transform_0, window_bounds = array<i64: 8, 784>}, {pipeline_mode = #tpu.pipeline_mode<synchronous>, transform_indices = @transform_1, window_bounds = array<i64: 784, 512>}, {pipeline_mode = #tpu.pipeline_mode<synchronous>, transform_indices = @transform_2, window_bounds = array<i64: 1, 512>}, {pipeline_mode = #tpu.pipeline_mode<synchronous>, transform_indices = @transform_3, window_bounds = array<i64: 512, 256>}, {pipeline_mode = #tpu.pipeline_mode<synchronous>, transform_indices = @transform_4, window_bounds = array<i64: 1, 256>}, {pipeline_mode = #tpu.pipeline_mode<synchronous>, transform_indices = @transform_5, window_bounds = array<i64: 256, 128>}, {pipeline_mode = #tpu.pipeline_mode<synchronous>, transform_indices = @transform_6, window_bounds = array<i64: 1, 128>}, {pipeline_mode = #tpu.pipeline_mode<synchronous>, transform_indices = @transform_7, window_bounds = array<i64: 128, 128>}, {pipeline_mode = #tpu.pipeline_mode<synchronous>, transform_indices = @transform_8, window_bounds = array<i64: 1, 128>}, {transform_indices = @transform_9, window_bounds = array<i64: 8, 128>}]} {
    %c0 = arith.constant 0 : index
    %c0_0 = arith.constant 0 : index
    %0 = vector.load %arg1[%c0, %c0_0] : memref<8x784xbf16, #tpu.memory_space<vmem>>, vector<8x784xbf16>
    %c0_1 = arith.constant 0 : index
    %c0_2 = arith.constant 0 : index
    %1 = vector.load %arg2[%c0_1, %c0_2] : memref<784x512xbf16, #tpu.memory_space<vmem>>, vector<784x512xbf16>
    %cst = arith.constant dense<0.000000e+00> : vector<8x512xf32>
    %2 = tpu.matmul %0, %1, %cst {dimension_numbers = #tpu.dot_dimension_numbers<[1], [0], [0], [1], [0, 0, 1, 1], [], []>} : vector<8x784xbf16>, vector<784x512xbf16>, vector<8x512xf32> -> vector<8x512xf32>
    %c0_3 = arith.constant 0 : index
    %c0_4 = arith.constant 0 : index
    %3 = vector.load %arg3[%c0_3, %c0_4] : memref<1x512xf32, #tpu.memory_space<vmem>>, vector<1x512xf32>
    %4 = vector.broadcast %3 : vector<1x512xf32> to vector<8x512xf32>
    %5 = arith.addf %2, %4 : vector<8x512xf32>
    %cst_5 = arith.constant 0.000000e+00 : f32
    %6 = vector.broadcast %cst_5 : f32 to vector<8x512xf32>
    %7 = arith.maximumf %5, %6 : vector<8x512xf32>
    %8 = arith.truncf %7 : vector<8x512xf32> to vector<8x512xbf16>
    %c0_6 = arith.constant 0 : index
    %c0_7 = arith.constant 0 : index
    %9 = vector.load %arg4[%c0_6, %c0_7] : memref<512x256xbf16, #tpu.memory_space<vmem>>, vector<512x256xbf16>
    %cst_8 = arith.constant dense<0.000000e+00> : vector<8x256xf32>
    %10 = tpu.matmul %8, %9, %cst_8 {dimension_numbers = #tpu.dot_dimension_numbers<[1], [0], [0], [1], [0, 0, 1, 1], [], []>} : vector<8x512xbf16>, vector<512x256xbf16>, vector<8x256xf32> -> vector<8x256xf32>
    %c0_9 = arith.constant 0 : index
    %c0_10 = arith.constant 0 : index
    %11 = vector.load %arg5[%c0_9, %c0_10] : memref<1x256xf32, #tpu.memory_space<vmem>>, vector<1x256xf32>
    %12 = vector.broadcast %11 : vector<1x256xf32> to vector<8x256xf32>
    %13 = arith.addf %10, %12 : vector<8x256xf32>
    %cst_11 = arith.constant 0.000000e+00 : f32
    %14 = vector.broadcast %cst_11 : f32 to vector<8x256xf32>
    %15 = arith.maximumf %13, %14 : vector<8x256xf32>
    %16 = arith.truncf %15 : vector<8x256xf32> to vector<8x256xbf16>
    %c0_12 = arith.constant 0 : index
    %c0_13 = arith.constant 0 : index
    %17 = vector.load %arg6[%c0_12, %c0_13] : memref<256x128xbf16, #tpu.memory_space<vmem>>, vector<256x128xbf16>
    %cst_14 = arith.constant dense<0.000000e+00> : vector<8x128xf32>
    %18 = tpu.matmul %16, %17, %cst_14 {dimension_numbers = #tpu.dot_dimension_numbers<[1], [0], [0], [1], [0, 0, 1, 1], [], []>} : vector<8x256xbf16>, vector<256x128xbf16>, vector<8x128xf32> -> vector<8x128xf32>
    %c0_15 = arith.constant 0 : index
    %c0_16 = arith.constant 0 : index
    %19 = vector.load %arg7[%c0_15, %c0_16] : memref<1x128xf32, #tpu.memory_space<vmem>>, vector<1x128xf32>
    %20 = vector.broadcast %19 : vector<1x128xf32> to vector<8x128xf32>
    %21 = arith.addf %18, %20 : vector<8x128xf32>
    %cst_17 = arith.constant 0.000000e+00 : f32
    %22 = vector.broadcast %cst_17 : f32 to vector<8x128xf32>
    %23 = arith.maximumf %21, %22 : vector<8x128xf32>
    %24 = arith.truncf %23 : vector<8x128xf32> to vector<8x128xbf16>
    %c0_18 = arith.constant 0 : index
    %c0_19 = arith.constant 0 : index
    %25 = vector.load %arg8[%c0_18, %c0_19] : memref<128x128xbf16, #tpu.memory_space<vmem>>, vector<128x128xbf16>
    %cst_20 = arith.constant dense<0.000000e+00> : vector<8x128xf32>
    %26 = tpu.matmul %24, %25, %cst_20 {dimension_numbers = #tpu.dot_dimension_numbers<[1], [0], [0], [1], [0, 0, 1, 1], [], []>} : vector<8x128xbf16>, vector<128x128xbf16>, vector<8x128xf32> -> vector<8x128xf32>
    %c0_21 = arith.constant 0 : index
    %c0_22 = arith.constant 0 : index
    %27 = vector.load %arg9[%c0_21, %c0_22] : memref<1x128xf32, #tpu.memory_space<vmem>>, vector<1x128xf32>
    %28 = vector.broadcast %27 : vector<1x128xf32> to vector<8x128xf32>
    %29 = arith.addf %26, %28 : vector<8x128xf32>
    %c0_23 = arith.constant 0 : index
    %c0_24 = arith.constant 0 : index
    %30 = vector.load %arg10[%c0_23, %c0_24] : memref<8x128xf32, #tpu.memory_space<vmem>>, vector<8x128xf32>
    tpu.vector_store %arg10[%c0_23, %c0_24], %29 {strides = array<i32>} : memref<8x128xf32, #tpu.memory_space<vmem>>, vector<8x128xf32>,
    return
  }
  func.func @transform_0(%arg0: i32) -> (i32, i32) {
    %c0_i32 = arith.constant 0 : i32
    %c0_i32_0 = arith.constant 0 : i32
    return %arg0, %c0_i32 : i32, i32
  }
  func.func @transform_1(%arg0: i32) -> (i32, i32) {
    %c0_i32 = arith.constant 0 : i32
    %c0_i32_0 = arith.constant 0 : i32
    %c0_i32_1 = arith.constant 0 : i32
    return %c0_i32, %c0_i32_0 : i32, i32
  }
  func.func @transform_2(%arg0: i32) -> (i32, i32) {
    %c0_i32 = arith.constant 0 : i32
    %c0_i32_0 = arith.constant 0 : i32
    %c0_i32_1 = arith.constant 0 : i32
    return %c0_i32, %c0_i32_0 : i32, i32
  }
  func.func @transform_3(%arg0: i32) -> (i32, i32) {
    %c0_i32 = arith.constant 0 : i32
    %c0_i32_0 = arith.constant 0 : i32
    %c0_i32_1 = arith.constant 0 : i32
    return %c0_i32, %c0_i32_0 : i32, i32
  }
  func.func @transform_4(%arg0: i32) -> (i32, i32) {
    %c0_i32 = arith.constant 0 : i32
    %c0_i32_0 = arith.constant 0 : i32
    %c0_i32_1 = arith.constant 0 : i32
    return %c0_i32, %c0_i32_0 : i32, i32
  }
  func.func @transform_5(%arg0: i32) -> (i32, i32) {
    %c0_i32 = arith.constant 0 : i32
    %c0_i32_0 = arith.constant 0 : i32
    %c0_i32_1 = arith.constant 0 : i32
    return %c0_i32, %c0_i32_0 : i32, i32
  }
  func.func @transform_6(%arg0: i32) -> (i32, i32) {
    %c0_i32 = arith.constant 0 : i32
    %c0_i32_0 = arith.constant 0 : i32
    %c0_i32_1 = arith.constant 0 : i32
    return %c0_i32, %c0_i32_0 : i32, i32
  }
  func.func @transform_7(%arg0: i32) -> (i32, i32) {
    %c0_i32 = arith.constant 0 : i32
    %c0_i32_0 = arith.constant 0 : i32
    %c0_i32_1 = arith.constant 0 : i32
    return %c0_i32, %c0_i32_0 : i32, i32
  }
  func.func @transform_8(%arg0: i32) -> (i32, i32) {
    %c0_i32 = arith.constant 0 : i32
    %c0_i32_0 = arith.constant 0 : i32
    %c0_i32_1 = arith.constant 0 : i32
    return %c0_i32, %c0_i32_0 : i32, i32
  }
  func.func @transform_9(%arg0: i32) -> (i32, i32) {
    %c0_i32 = arith.constant 0 : i32
    %c0_i32_0 = arith.constant 0 : i32
    return %arg0, %c0_i32 : i32, i32
  }
}

</mosaic_0001>

<llo_original>
// kernel: custom_model_forward.1
$region0: #{custom_model_forward.1}
  #allocation0 [shape = 'u32[]', space=smem, size = 0x4, offset = 0x4, fixed_abs, tag = 'smem constant byte address 0x4 - core index']
  #allocation1 [shape = 'u32[144,128]{1,0:T(1,128)}', space=vmem, size = 0x12000, scoped, tag = 'internal scratch']
  %s0 = inlined_call_operand.hbm [shape: bf16[8,784], index: 0, kind: input, shape index: {}]
  %s1 = inlined_call_operand.hbm [shape: bf16[784,512], index: 1, kind: input, shape index: {}]
  %s2 = inlined_call_operand.hbm [shape: f32[1,512], index: 2, kind: input, shape index: {}]
  %s3 = inlined_call_operand.hbm [shape: bf16[512,256], index: 3, kind: input, shape index: {}]
  %s4 = inlined_call_operand.vmem [shape: f32[1,256], index: 4, kind: input, shape index: {}]
  %s5 = inlined_call_operand.hbm [shape: bf16[256,128], index: 5, kind: input, shape index: {}]
  %s6 = inlined_call_operand.vmem [shape: f32[1,128], index: 6, kind: input, shape index: {}]
  %s7 = inlined_call_operand.hbm [shape: bf16[128,128], index: 7, kind: input, shape index: {}]
  %s8 = inlined_call_operand.vmem [shape: f32[1,128], index: 8, kind: input, shape index: {}]
  %s9 = inlined_call_operand.hbm [shape: f32[8,128], index: 9, kind: output, shape index: {}]
  %s10 = sld [smem:[#allocation0]]
  $region70: #{custom_model_forward.1} parent=0
    _
  %s12 = ssub.s32 1, %s10
  %s13 = scalar_select 0, %s12, %s10
  $region1: #{custom_model_forward.1} parent=0
    #allocation2 [shape = 'u8[14336]{0}', space=vmem, size = 0x3800, scoped, tag = 'input window, operand 0, single buffered']
    #allocation3 [shape = 's32[1]{0}', space=sflag, size = 0x4, scoped, tag = 'scoped memory for custom_model_forward.1']
    #allocation4 [shape = 's32[1]{0}', space=sflag, size = 0x4, scoped, tag = 'scoped memory for custom_model_forward.1']
    #allocation5 [shape = 'u8[802816]{0}', space=vmem, size = 0xc4000, scoped, tag = 'input window, operand 1, single buffered']
    #allocation6 [shape = 's32[1]{0}', space=sflag, size = 0x4, scoped, tag = 'scoped memory for custom_model_forward.1']
    #allocation7 [shape = 'u8[2048]{0}', space=vmem, size = 0x800, scoped, tag = 'input window, operand 2, single buffered']
    #allocation8 [shape = 'u8[262144]{0}', space=vmem, size = 0x40000, scoped, tag = 'input window, operand 3, single buffered']
    #allocation9 [shape = 's32[1]{0}', space=sflag, size = 0x4, scoped, tag = 'scoped memory for custom_model_forward.1']
    #allocation10 [shape = 'u8[65536]{0}', space=vmem, size = 0x10000, scoped, tag = 'input window, operand 5, single buffered']
    #allocation11 [shape = 'u8[32768]{0}', space=vmem, size = 0x8000, scoped, tag = 'input window, operand 7, single buffered']
    #allocation12 [shape = 's32[1]{0}', space=sflag, size = 0x4, scoped, tag = 'scoped memory for custom_model_forward.1']
    #allocation13 [shape = 'u8[4096]{0}', space=vmem, size = 0x1000, scoped, tag = 'output window, operand 0, single buffered']
    %14 = vsyncpa [#allocation3], 0
    %15 = vsyncpa [#allocation6], 0
    %16 = vsyncpa [#allocation9], 0
    %17 = vsyncpa [#allocation12], 0
    %18 = vsyncpa [#allocation4], 0
    // Predicated region
    $region2: #{custom_model_forward.1} parent=1 // pred_check
      _
    $region3: #{custom_model_forward.1} parent=1 // pred_check_branch
      %20 = sbr.rel (0) target = $region5
    $region4: #{custom_model_forward.1} parent=1 // pred_region
      %s22 = ssub.s32 448, 448
      %23 = vsyncadd [#allocation3], %s22
      %s25 = sshll.u32 [#allocation2], 4
      %s26 = int_to_ptr.vmem [resolvable:$true] %s25
      %28 = dma.hbm_to_vmem [thread:$0]  %s0, 448, %s26, [#allocation3]
    $region5: #{custom_model_forward.1} parent=1 // pred_fallthru
      _
    // Predicated region
    $region6: #{custom_model_forward.1} parent=1 // pred_check
      _
    $region7: #{custom_model_forward.1} parent=1 // pred_check_branch
      %30 = sbr.rel (0) target = $region9
    $region8: #{custom_model_forward.1} parent=1 // pred_region
      %s32 = ssub.s32 25088, 25088
      %33 = vsyncadd [#allocation6], %s32
      %s34 = sshll.u32 [#allocation5], 4
      %s35 = int_to_ptr.vmem [resolvable:$true] %s34
      %40 = dma.hbm_to_vmem [thread:$0]  %s1, 25088, %s35, [#allocation6], 256, 256, 16
    $region9: #{custom_model_forward.1} parent=1 // pred_fallthru
      _
    // Predicated region
    $region10: #{custom_model_forward.1} parent=1 // pred_check
      _
    $region11: #{custom_model_forward.1} parent=1 // pred_check_branch
      %42 = sbr.rel (0) target = $region13
    $region12: #{custom_model_forward.1} parent=1 // pred_region
      %s44 = ssub.s32 64, 64
      %45 = vsyncadd [#allocation6], %s44
      %s47 = sshll.u32 [#allocation7], 4
      %s48 = int_to_ptr.vmem [resolvable:$true] %s47
      %50 = dma.hbm_to_vmem [thread:$0]  %s2, 64, %s48, [#allocation6]
    $region13: #{custom_model_forward.1} parent=1 // pred_fallthru
      _
    // Predicated region
    $region14: #{custom_model_forward.1} parent=1 // pred_check
      _
    $region15: #{custom_model_forward.1} parent=1 // pred_check_branch
      %52 = sbr.rel (0) target = $region17
    $region16: #{custom_model_forward.1} parent=1 // pred_region
      %s54 = ssub.s32 8192, 8192
      %55 = vsyncadd [#allocation9], %s54
      %s56 = sshll.u32 [#allocation8], 4
      %s57 = int_to_ptr.vmem [resolvable:$true] %s56
      %62 = dma.hbm_to_vmem [thread:$0]  %s3, 8192, %s57, [#allocation9], 128, 128, 8
    $region17: #{custom_model_forward.1} parent=1 // pred_fallthru
      _
    // Predicated region
    $region18: #{custom_model_forward.1} parent=1 // pred_check
      _
    $region19: #{custom_model_forward.1} parent=1 // pred_check_branch
      %64 = sbr.rel (0) target = $region21
    $region20: #{custom_model_forward.1} parent=1 // pred_region
      _
    $region21: #{custom_model_forward.1} parent=1 // pred_fallthru
      _
    // Predicated region
    $region22: #{custom_model_forward.1} parent=1 // pred_check
      _
    $region23: #{custom_model_forward.1} parent=1 // pred_check_branch
      %66 = sbr.rel (0) target = $region25
    $region24: #{custom_model_forward.1} parent=1 // pred_region
      %s68 = ssub.s32 2048, 2048
      %69 = vsyncadd [#allocation9], %s68
      %s70 = sshll.u32 [#allocation10], 4
      %s71 = int_to_ptr.vmem [resolvable:$true] %s70
      %76 = dma.hbm_to_vmem [thread:$0]  %s5, 2048, %s71, [#allocation9], 64, 64, 4
    $region25: #{custom_model_forward.1} parent=1 // pred_fallthru
      _
    // Predicated region
    $region26: #{custom_model_forward.1} parent=1 // pred_check
      _
    $region27: #{custom_model_forward.1} parent=1 // pred_check_branch
      %78 = sbr.rel (0) target = $region29
    $region28: #{custom_model_forward.1} parent=1 // pred_region
      _
    $region29: #{custom_model_forward.1} parent=1 // pred_fallthru
      _
    // Predicated region
    $region30: #{custom_model_forward.1} parent=1 // pred_check
      _
    $region31: #{custom_model_forward.1} parent=1 // pred_check_branch
      %80 = sbr.rel (0) target = $region33
    $region32: #{custom_model_forward.1} parent=1 // pred_region
      %s82 = ssub.s32 1024, 1024
      %83 = vsyncadd [#allocation12], %s82
      %s84 = sshll.u32 [#allocation11], 4
      %s85 = int_to_ptr.vmem [resolvable:$true] %s84
      %90 = dma.hbm_to_vmem [thread:$0]  %s7, 1024, %s85, [#allocation12], 64, 64, 4
    $region33: #{custom_model_forward.1} parent=1 // pred_fallthru
      _
    // Predicated region
    $region34: #{custom_model_forward.1} parent=1 // pred_check
      _
    $region35: #{custom_model_forward.1} parent=1 // pred_check_branch
      %92 = sbr.rel (0) target = $region37
    $region36: #{custom_model_forward.1} parent=1 // pred_region
      _
    $region37: #{custom_model_forward.1} parent=1 // pred_fallthru
      _
    // Predicated region
    $region38: #{custom_model_forward.1} parent=1 // pred_check
      _
    $region39: #{custom_model_forward.1} parent=1 // pred_check_branch
      %94 = sbr.rel (0) target = $region41
    $region40: #{custom_model_forward.1} parent=1 // pred_region
      %95 = dma.done [#allocation3], 448
    $region41: #{custom_model_forward.1} parent=1 // pred_fallthru
      _
    // Predicated region
    $region42: #{custom_model_forward.1} parent=1 // pred_check
      _
    $region43: #{custom_model_forward.1} parent=1 // pred_check_branch
      %97 = sbr.rel (0) target = $region45
    $region44: #{custom_model_forward.1} parent=1 // pred_region
      %98 = dma.done [#allocation6], 25088
    $region45: #{custom_model_forward.1} parent=1 // pred_fallthru
      _
    // Predicated region
    $region46: #{custom_model_forward.1} parent=1 // pred_check
      _
    $region47: #{custom_model_forward.1} parent=1 // pred_check_branch
      %100 = sbr.rel (0) target = $region49
    $region48: #{custom_model_forward.1} parent=1 // pred_region
      %101 = dma.done [#allocation6], 64
    $region49: #{custom_model_forward.1} parent=1 // pred_fallthru
      _
    // Predicated region
    $region50: #{custom_model_forward.1} parent=1 // pred_check
      _
    $region51: #{custom_model_forward.1} parent=1 // pred_check_branch
      %103 = sbr.rel (0) target = $region53
    $region52: #{custom_model_forward.1} parent=1 // pred_region
      %104 = dma.done [#allocation9], 8192
    $region53: #{custom_model_forward.1} parent=1 // pred_fallthru
      _
    // Predicated region
    $region54: #{custom_model_forward.1} parent=1 // pred_check
      _
    $region55: #{custom_model_forward.1} parent=1 // pred_check_branch
      %106 = sbr.rel (0) target = $region57
    $region56: #{custom_model_forward.1} parent=1 // pred_region
      %107 = dma.done [#allocation9], 2048
    $region57: #{custom_model_forward.1} parent=1 // pred_fallthru
      _
    // Predicated region
    $region58: #{custom_model_forward.1} parent=1 // pred_check
      _
    $region59: #{custom_model_forward.1} parent=1 // pred_check_branch
      %109 = sbr.rel (0) target = $region61
    $region60: #{custom_model_forward.1} parent=1 // pred_region
      %110 = dma.done [#allocation12], 1024
    $region61: #{custom_model_forward.1} parent=1 // pred_fallthru
      _
    %v112 = vld [vmem:[#allocation2] sm:$0xff]
    %v113 = vld [vmem:[#allocation2 + $0x8] sm:$0xff]
    %v114 = vld [vmem:[#allocation2 + $0x10] sm:$0xff]
    %v115 = vld [vmem:[#allocation2 + $0x18] sm:$0xf]
    %v116 = vld [vmem:[#allocation5] sm:$0xff]
    %v117 = vld [vmem:[#allocation5 + $0x8] sm:$0xff]
    %v118 = vld [vmem:[#allocation5 + $0x10] sm:$0xff]
    %v119 = vld [vmem:[#allocation5 + $0x18] sm:$0xff]
    %v120 = vld [vmem:[#allocation5 + $0x20] sm:$0xff]
    %v121 = vld [vmem:[#allocation5 + $0x28] sm:$0xff]
    %v122 = vld [vmem:[#allocation5 + $0x30] sm:$0xff]
    %v123 = vld [vmem:[#allocation5 + $0x38] sm:$0xff]
    %v124 = vld [vmem:[#allocation5 + $0x40] sm:$0xff]
    %v125 = vld [vmem:[#allocation5 + $0x48] sm:$0xff]
    %v126 = vld [vmem:[#allocation5 + $0x50] sm:$0xff]
    %v127 = vld [vmem:[#allocation5 + $0x58] sm:$0xff]
    %v128 = vld [vmem:[#allocation5 + $0x60] sm:$0xff]
    %v129 = vld [vmem:[#allocation5 + $0x68] sm:$0xff]
    %v130 = vld [vmem:[#allocation5 + $0x70] sm:$0xff]
    %v131 = vld [vmem:[#allocation5 + $0x78] sm:$0xff]
    %v132 = vld [vmem:[#allocation5 + $0x80] sm:$0xff]
    %v133 = vld [vmem:[#allocation5 + $0x88] sm:$0xff]
    %v134 = vld [vmem:[#allocation5 + $0x90] sm:$0xff]
    %v135 = vld [vmem:[#allocation5 + $0x98] sm:$0xff]
    %v136 = vld [vmem:[#allocation5 + $0xa0] sm:$0xff]
    %v137 = vld [vmem:[#allocation5 + $0xa8] sm:$0xff]
    %v138 = vld [vmem:[#allocation5 + $0xb0] sm:$0xff]
    %v139 = vld [vmem:[#allocation5 + $0xb8] sm:$0xff]
    %v140 = vld [vmem:[#allocation5 + $0xc0] sm:$0xff]
    %v141 = vld [vmem:[#allocation5 + $0xc8] sm:$0xff]
    %v142 = vld [vmem:[#allocation5 + $0xd0] sm:$0xff]
    %v143 = vld [vmem:[#allocation5 + $0xd8] sm:$0xff]
    %v144 = vld [vmem:[#allocation5 + $0xe0] sm:$0xff]
    %v145 = vld [vmem:[#allocation5 + $0xe8] sm:$0xff]
    %v146 = vld [vmem:[#allocation5 + $0xf0] sm:$0xff]
    %v147 = vld [vmem:[#allocation5 + $0xf8] sm:$0xff]
    %v148 = vld [vmem:[#allocation5 + $0x100] sm:$0xff]
    %v149 = vld [vmem:[#allocation5 + $0x108] sm:$0xff]
    %v150 = vld [vmem:[#allocation5 + $0x110] sm:$0xff]
    %v151 = vld [vmem:[#allocation5 + $0x118] sm:$0xff]
    %v152 = vld [vmem:[#allocation5 + $0x120] sm:$0xff]
    %v153 = vld [vmem:[#allocation5 + $0x128] sm:$0xff]
    %v154 = vld [vmem:[#allocation5 + $0x130] sm:$0xff]
    %v155 = vld [vmem:[#allocation5 + $0x138] sm:$0xff]
    %v156 = vld [vmem:[#allocation5 + $0x140] sm:$0xff]
    %v157 = vld [vmem:[#allocation5 + $0x148] sm:$0xff]
    %v158 = vld [vmem:[#allocation5 + $0x150] sm:$0xff]
    %v159 = vld [vmem:[#allocation5 + $0x158] sm:$0xff]
    %v160 = vld [vmem:[#allocation5 + $0x160] sm:$0xff]
    %v161 = vld [vmem:[#allocation5 + $0x168] sm:$0xff]
    %v162 = vld [vmem:[#allocation5 + $0x170] sm:$0xff]
    %v163 = vld [vmem:[#allocation5 + $0x178] sm:$0xff]
    %v164 = vld [vmem:[#allocation5 + $0x180] sm:$0xff]
    %v165 = vld [vmem:[#allocation5 + $0x188] sm:$0xff]
    %v166 = vld [vmem:[#allocation5 + $0x190] sm:$0xff]
    %v167 = vld [vmem:[#allocation5 + $0x198] sm:$0xff]
    %v168 = vld [vmem:[#allocation5 + $0x1a0] sm:$0xff]
    %v169 = vld [vmem:[#allocation5 + $0x1a8] sm:$0xff]
    %v170 = vld [vmem:[#allocation5 + $0x1b0] sm:$0xff]
    %v171 = vld [vmem:[#allocation5 + $0x1b8] sm:$0xff]
    %v172 = vld [vmem:[#allocation5 + $0x1c0] sm:$0xff]
    %v173 = vld [vmem:[#allocation5 + $0x1c8] sm:$0xff]
    %v174 = vld [vmem:[#allocation5 + $0x1d0] sm:$0xff]
    %v175 = vld [vmem:[#allocation5 + $0x1d8] sm:$0xff]
    %v176 = vld [vmem:[#allocation5 + $0x1e0] sm:$0xff]
    %v177 = vld [vmem:[#allocation5 + $0x1e8] sm:$0xff]
    %v178 = vld [vmem:[#allocation5 + $0x1f0] sm:$0xff]
    %v179 = vld [vmem:[#allocation5 + $0x1f8] sm:$0xff]
    %v180 = vld [vmem:[#allocation5 + $0x200] sm:$0xff]
    %v181 = vld [vmem:[#allocation5 + $0x208] sm:$0xff]
    %v182 = vld [vmem:[#allocation5 + $0x210] sm:$0xff]
    %v183 = vld [vmem:[#allocation5 + $0x218] sm:$0xff]
    %v184 = vld [vmem:[#allocation5 + $0x220] sm:$0xff]
    %v185 = vld [vmem:[#allocation5 + $0x228] sm:$0xff]
    %v186 = vld [vmem:[#allocation5 + $0x230] sm:$0xff]
    %v187 = vld [vmem:[#allocation5 + $0x238] sm:$0xff]
    %v188 = vld [vmem:[#allocation5 + $0x240] sm:$0xff]
    %v189 = vld [vmem:[#allocation5 + $0x248] sm:$0xff]
    %v190 = vld [vmem:[#allocation5 + $0x250] sm:$0xff]
    %v191 = vld [vmem:[#allocation5 + $0x258] sm:$0xff]
    %v192 = vld [vmem:[#allocation5 + $0x260] sm:$0xff]
    %v193 = vld [vmem:[#allocation5 + $0x268] sm:$0xff]
    %v194 = vld [vmem:[#allocation5 + $0x270] sm:$0xff]
    %v195 = vld [vmem:[#allocation5 + $0x278] sm:$0xff]
    %v196 = vld [vmem:[#allocation5 + $0x280] sm:$0xff]
    %v197 = vld [vmem:[#allocation5 + $0x288] sm:$0xff]
    %v198 = vld [vmem:[#allocation5 + $0x290] sm:$0xff]
    %v199 = vld [vmem:[#allocation5 + $0x298] sm:$0xff]
    %v200 = vld [vmem:[#allocation5 + $0x2a0] sm:$0xff]
    %v201 = vld [vmem:[#allocation5 + $0x2a8] sm:$0xff]
    %v202 = vld [vmem:[#allocation5 + $0x2b0] sm:$0xff]
    %v203 = vld [vmem:[#allocation5 + $0x2b8] sm:$0xff]
    %v204 = vld [vmem:[#allocation5 + $0x2c0] sm:$0xff]
    %v205 = vld [vmem:[#allocation5 + $0x2c8] sm:$0xff]
    %v206 = vld [vmem:[#allocation5 + $0x2d0] sm:$0xff]
    %v207 = vld [vmem:[#allocation5 + $0x2d8] sm:$0xff]
    %v208 = vld [vmem:[#allocation5 + $0x2e0] sm:$0xff]
    %v209 = vld [vmem:[#allocation5 + $0x2e8] sm:$0xff]
    %v210 = vld [vmem:[#allocation5 + $0x2f0] sm:$0xff]
    %v211 = vld [vmem:[#allocation5 + $0x2f8] sm:$0xff]
    %v212 = vld [vmem:[#allocation5 + $0x300] sm:$0xff]
    %v213 = vld [vmem:[#allocation5 + $0x308] sm:$0xff]
    %v214 = vld [vmem:[#allocation5 + $0x310] sm:$0xff]
    %v215 = vld [vmem:[#allocation5 + $0x318] sm:$0xff]
    %v216 = vld [vmem:[#allocation5 + $0x320] sm:$0xff]
    %v217 = vld [vmem:[#allocation5 + $0x328] sm:$0xff]
    %v218 = vld [vmem:[#allocation5 + $0x330] sm:$0xff]
    %v219 = vld [vmem:[#allocation5 + $0x338] sm:$0xff]
    %v220 = vld [vmem:[#allocation5 + $0x340] sm:$0xff]
    %v221 = vld [vmem:[#allocation5 + $0x348] sm:$0xff]
    %v222 = vld [vmem:[#allocation5 + $0x350] sm:$0xff]
    %v223 = vld [vmem:[#allocation5 + $0x358] sm:$0xff]
    %v224 = vld [vmem:[#allocation5 + $0x360] sm:$0xff]
    %v225 = vld [vmem:[#allocation5 + $0x368] sm:$0xff]
    %v226 = vld [vmem:[#allocation5 + $0x370] sm:$0xff]
    %v227 = vld [vmem:[#allocation5 + $0x378] sm:$0xff]
    %v228 = vld [vmem:[#allocation5 + $0x380] sm:$0xff]
    %v229 = vld [vmem:[#allocation5 + $0x388] sm:$0xff]
    %v230 = vld [vmem:[#allocation5 + $0x390] sm:$0xff]
    %v231 = vld [vmem:[#allocation5 + $0x398] sm:$0xff]
    %v232 = vld [vmem:[#allocation5 + $0x3a0] sm:$0xff]
    %v233 = vld [vmem:[#allocation5 + $0x3a8] sm:$0xff]
    %v234 = vld [vmem:[#allocation5 + $0x3b0] sm:$0xff]
    %v235 = vld [vmem:[#allocation5 + $0x3b8] sm:$0xff]
    %v236 = vld [vmem:[#allocation5 + $0x3c0] sm:$0xff]
    %v237 = vld [vmem:[#allocation5 + $0x3c8] sm:$0xff]
    %v238 = vld [vmem:[#allocation5 + $0x3d0] sm:$0xff]
    %v239 = vld [vmem:[#allocation5 + $0x3d8] sm:$0xff]
    %v240 = vld [vmem:[#allocation5 + $0x3e0] sm:$0xff]
    %v241 = vld [vmem:[#allocation5 + $0x3e8] sm:$0xff]
    %v242 = vld [vmem:[#allocation5 + $0x3f0] sm:$0xff]
    %v243 = vld [vmem:[#allocation5 + $0x3f8] sm:$0xff]
    %v244 = vld [vmem:[#allocation5 + $0x400] sm:$0xff]
    %v245 = vld [vmem:[#allocation5 + $0x408] sm:$0xff]
    %v246 = vld [vmem:[#allocation5 + $0x410] sm:$0xff]
    %v247 = vld [vmem:[#allocation5 + $0x418] sm:$0xff]
    %v248 = vld [vmem:[#allocation5 + $0x420] sm:$0xff]
    %v249 = vld [vmem:[#allocation5 + $0x428] sm:$0xff]
    %v250 = vld [vmem:[#allocation5 + $0x430] sm:$0xff]
    %v251 = vld [vmem:[#allocation5 + $0x438] sm:$0xff]
    %v252 = vld [vmem:[#allocation5 + $0x440] sm:$0xff]
    %v253 = vld [vmem:[#allocation5 + $0x448] sm:$0xff]
    %v254 = vld [vmem:[#allocation5 + $0x450] sm:$0xff]
    %v255 = vld [vmem:[#allocation5 + $0x458] sm:$0xff]
    %v256 = vld [vmem:[#allocation5 + $0x460] sm:$0xff]
    %v257 = vld [vmem:[#allocation5 + $0x468] sm:$0xff]
    %v258 = vld [vmem:[#allocation5 + $0x470] sm:$0xff]
    %v259 = vld [vmem:[#allocation5 + $0x478] sm:$0xff]
    %v260 = vld [vmem:[#allocation5 + $0x480] sm:$0xff]
    %v261 = vld [vmem:[#allocation5 + $0x488] sm:$0xff]
    %v262 = vld [vmem:[#allocation5 + $0x490] sm:$0xff]
    %v263 = vld [vmem:[#allocation5 + $0x498] sm:$0xff]
    %v264 = vld [vmem:[#allocation5 + $0x4a0] sm:$0xff]
    %v265 = vld [vmem:[#allocation5 + $0x4a8] sm:$0xff]
    %v266 = vld [vmem:[#allocation5 + $0x4b0] sm:$0xff]
    %v267 = vld [vmem:[#allocation5 + $0x4b8] sm:$0xff]
    %v268 = vld [vmem:[#allocation5 + $0x4c0] sm:$0xff]
    %v269 = vld [vmem:[#allocation5 + $0x4c8] sm:$0xff]
    %v270 = vld [vmem:[#allocation5 + $0x4d0] sm:$0xff]
    %v271 = vld [vmem:[#allocation5 + $0x4d8] sm:$0xff]
    %v272 = vld [vmem:[#allocation5 + $0x4e0] sm:$0xff]
    %v273 = vld [vmem:[#allocation5 + $0x4e8] sm:$0xff]
    %v274 = vld [vmem:[#allocation5 + $0x4f0] sm:$0xff]
    %v275 = vld [vmem:[#allocation5 + $0x4f8] sm:$0xff]
    %v276 = vld [vmem:[#allocation5 + $0x500] sm:$0xff]
    %v277 = vld [vmem:[#allocation5 + $0x508] sm:$0xff]
    %v278 = vld [vmem:[#allocation5 + $0x510] sm:$0xff]
    %v279 = vld [vmem:[#allocation5 + $0x518] sm:$0xff]
    %v280 = vld [vmem:[#allocation5 + $0x520] sm:$0xff]
    %v281 = vld [vmem:[#allocation5 + $0x528] sm:$0xff]
    %v282 = vld [vmem:[#allocation5 + $0x530] sm:$0xff]
    %v283 = vld [vmem:[#allocation5 + $0x538] sm:$0xff]
    %v284 = vld [vmem:[#allocation5 + $0x540] sm:$0xff]
    %v285 = vld [vmem:[#allocation5 + $0x548] sm:$0xff]
    %v286 = vld [vmem:[#allocation5 + $0x550] sm:$0xff]
    %v287 = vld [vmem:[#allocation5 + $0x558] sm:$0xff]
    %v288 = vld [vmem:[#allocation5 + $0x560] sm:$0xff]
    %v289 = vld [vmem:[#allocation5 + $0x568] sm:$0xff]
    %v290 = vld [vmem:[#allocation5 + $0x570] sm:$0xff]
    %v291 = vld [vmem:[#allocation5 + $0x578] sm:$0xff]
    %v292 = vld [vmem:[#allocation5 + $0x580] sm:$0xff]
    %v293 = vld [vmem:[#allocation5 + $0x588] sm:$0xff]
    %v294 = vld [vmem:[#allocation5 + $0x590] sm:$0xff]
    %v295 = vld [vmem:[#allocation5 + $0x598] sm:$0xff]
    %v296 = vld [vmem:[#allocation5 + $0x5a0] sm:$0xff]
    %v297 = vld [vmem:[#allocation5 + $0x5a8] sm:$0xff]
    %v298 = vld [vmem:[#allocation5 + $0x5b0] sm:$0xff]
    %v299 = vld [vmem:[#allocation5 + $0x5b8] sm:$0xff]
    %v300 = vld [vmem:[#allocation5 + $0x5c0] sm:$0xff]
    %v301 = vld [vmem:[#allocation5 + $0x5c8] sm:$0xff]
    %v302 = vld [vmem:[#allocation5 + $0x5d0] sm:$0xff]
    %v303 = vld [vmem:[#allocation5 + $0x5d8] sm:$0xff]
    %v304 = vld [vmem:[#allocation5 + $0x5e0] sm:$0xff]
    %v305 = vld [vmem:[#allocation5 + $0x5e8] sm:$0xff]
    %v306 = vld [vmem:[#allocation5 + $0x5f0] sm:$0xff]
    %v307 = vld [vmem:[#allocation5 + $0x5f8] sm:$0xff]
    %v308 = vld [vmem:[#allocation5 + $0x600] sm:$0xff]
    %v309 = vld [vmem:[#allocation5 + $0x608] sm:$0xff]
    %v310 = vld [vmem:[#allocation5 + $0x610] sm:$0xff]
    %v311 = vld [vmem:[#allocation5 + $0x618] sm:$0xff]
    %v312 = vld [vmem:[#allocation7] sm:$0xf]
    %v314 = vlaneseq
    %v315 = vshrl.u32 %v314, 7
    %v316 = vsub.s32 0, %v315
    %v317 = vrot.slane %v312, %v316
    %v318 = vlaneseq
    %v319 = vshrl.u32 %v318, 7
    %v320 = vsub.s32 1, %v319
    %v321 = vrot.slane %v312, %v320
    %v322 = vlaneseq
    %v323 = vshrl.u32 %v322, 7
    %v324 = vsub.s32 2, %v323
    %v325 = vrot.slane %v312, %v324
    %v326 = vlaneseq
    %v327 = vshrl.u32 %v326, 7
    %v328 = vsub.s32 3, %v327
    %v329 = vrot.slane %v312, %v328
    %v338 = vunpack.c.l.b16 %v112
    %v339 = vunpack.c.h.b16 %v112
    %v340 = vunpack.c.l.b16 %v113
    %v341 = vunpack.c.h.b16 %v113
    %v342 = vunpack.c.l.b16 %v114
    %v343 = vunpack.c.h.b16 %v114
    %v344 = vunpack.c.l.b16 %v115
    %v345 = vpack.c.b16 %v338, %v338
    %v346 = vpack.c.b16 %v339, %v339
    %v347 = vpack.c.b16 %v340, %v340
    %v348 = vpack.c.b16 %v341, %v341
    %v349 = vpack.c.b16 %v342, %v342
    %v350 = vpack.c.b16 %v343, %v343
    %v351 = vpack.c.b16 %v344, %v344
    %v554 = vunpack.c.l.b16 %v116
    %v555 = vunpack.c.h.b16 %v116
    %v556 = vunpack.c.l.b16 %v117
    %v557 = vunpack.c.h.b16 %v117
    %v558 = vunpack.c.l.b16 %v118
    %v559 = vunpack.c.h.b16 %v118
    %v560 = vunpack.c.l.b16 %v119
    %v561 = vunpack.c.h.b16 %v119
    %v562 = vunpack.c.l.b16 %v120
    %v563 = vunpack.c.h.b16 %v120
    %v564 = vunpack.c.l.b16 %v121
    %v565 = vunpack.c.h.b16 %v121
    %v566 = vunpack.c.l.b16 %v122
    %v567 = vunpack.c.h.b16 %v122
    %v568 = vunpack.c.l.b16 %v123
    %v569 = vunpack.c.h.b16 %v123
    %v570 = vunpack.c.l.b16 %v124
    %v571 = vunpack.c.h.b16 %v124
    %v572 = vunpack.c.l.b16 %v125
    %v573 = vunpack.c.h.b16 %v125
    %v574 = vunpack.c.l.b16 %v126
    %v575 = vunpack.c.h.b16 %v126
    %v576 = vunpack.c.l.b16 %v127
    %v577 = vunpack.c.h.b16 %v127
    %v578 = vunpack.c.l.b16 %v128
    %v579 = vunpack.c.h.b16 %v128
    %v580 = vunpack.c.l.b16 %v129
    %v581 = vunpack.c.h.b16 %v129
    %v582 = vunpack.c.l.b16 %v130
    %v583 = vunpack.c.h.b16 %v130
    %v584 = vunpack.c.l.b16 %v131
    %v585 = vunpack.c.h.b16 %v131
    %v586 = vunpack.c.l.b16 %v132
    %v587 = vunpack.c.h.b16 %v132
    %v588 = vunpack.c.l.b16 %v133
    %v589 = vunpack.c.h.b16 %v133
    %v590 = vunpack.c.l.b16 %v134
    %v591 = vunpack.c.h.b16 %v134
    %v592 = vunpack.c.l.b16 %v135
    %v593 = vunpack.c.h.b16 %v135
    %v594 = vunpack.c.l.b16 %v136
    %v595 = vunpack.c.h.b16 %v136
    %v596 = vunpack.c.l.b16 %v137
    %v597 = vunpack.c.h.b16 %v137
    %v598 = vunpack.c.l.b16 %v138
    %v599 = vunpack.c.h.b16 %v138
    %v600 = vunpack.c.l.b16 %v139
    %v601 = vunpack.c.h.b16 %v139
    %v602 = vunpack.c.l.b16 %v140
    %v603 = vunpack.c.h.b16 %v140
    %v604 = vunpack.c.l.b16 %v141
    %v605 = vunpack.c.h.b16 %v141
    %v606 = vunpack.c.l.b16 %v142
    %v607 = vunpack.c.h.b16 %v142
    %v608 = vunpack.c.l.b16 %v143
    %v609 = vunpack.c.h.b16 %v143
    %v610 = vunpack.c.l.b16 %v144
    %v611 = vunpack.c.h.b16 %v144
    %v612 = vunpack.c.l.b16 %v145
    %v613 = vunpack.c.h.b16 %v145
    %v614 = vunpack.c.l.b16 %v146
    %v615 = vunpack.c.h.b16 %v146
    %v616 = vunpack.c.l.b16 %v147
    %v617 = vunpack.c.h.b16 %v147
    %v618 = vunpack.c.l.b16 %v148
    %v619 = vunpack.c.h.b16 %v148
    %v620 = vunpack.c.l.b16 %v149
    %v621 = vunpack.c.h.b16 %v149
    %v622 = vunpack.c.l.b16 %v150
    %v623 = vunpack.c.h.b16 %v150
    %v624 = vunpack.c.l.b16 %v151
    %v625 = vunpack.c.h.b16 %v151
    %v626 = vunpack.c.l.b16 %v152
    %v627 = vunpack.c.h.b16 %v152
    %v628 = vunpack.c.l.b16 %v153
    %v629 = vunpack.c.h.b16 %v153
    %v630 = vunpack.c.l.b16 %v154
    %v631 = vunpack.c.h.b16 %v154
    %v632 = vunpack.c.l.b16 %v155
    %v633 = vunpack.c.h.b16 %v155
    %v634 = vunpack.c.l.b16 %v156
    %v635 = vunpack.c.h.b16 %v156
    %v636 = vunpack.c.l.b16 %v157
    %v637 = vunpack.c.h.b16 %v157
    %v638 = vunpack.c.l.b16 %v158
    %v639 = vunpack.c.h.b16 %v158
    %v640 = vunpack.c.l.b16 %v159
    %v641 = vunpack.c.h.b16 %v159
    %v642 = vunpack.c.l.b16 %v160
    %v643 = vunpack.c.h.b16 %v160
    %v644 = vunpack.c.l.b16 %v161
    %v645 = vunpack.c.h.b16 %v161
    %v646 = vunpack.c.l.b16 %v162
    %v647 = vunpack.c.h.b16 %v162
    %v648 = vunpack.c.l.b16 %v163
    %v649 = vunpack.c.h.b16 %v163
    %v650 = vunpack.c.l.b16 %v164
    %v651 = vunpack.c.h.b16 %v164
    %v652 = vunpack.c.l.b16 %v165
    %v653 = vunpack.c.h.b16 %v165
    %v654 = vunpack.c.l.b16 %v166
    %v655 = vunpack.c.h.b16 %v166
    %v656 = vunpack.c.l.b16 %v167
    %v657 = vunpack.c.h.b16 %v167
    %v658 = vunpack.c.l.b16 %v168
    %v659 = vunpack.c.h.b16 %v168
    %v660 = vunpack.c.l.b16 %v169
    %v661 = vunpack.c.h.b16 %v169
    %v662 = vunpack.c.l.b16 %v170
    %v663 = vunpack.c.h.b16 %v170
    %v664 = vunpack.c.l.b16 %v171
    %v665 = vunpack.c.h.b16 %v171
    %v666 = vunpack.c.l.b16 %v172
    %v667 = vunpack.c.h.b16 %v172
    %v668 = vunpack.c.l.b16 %v173
    %v669 = vunpack.c.h.b16 %v173
    %v670 = vunpack.c.l.b16 %v174
    %v671 = vunpack.c.h.b16 %v174
    %v672 = vunpack.c.l.b16 %v175
    %v673 = vunpack.c.h.b16 %v175
    %v674 = vunpack.c.l.b16 %v176
    %v675 = vunpack.c.h.b16 %v176
    %v676 = vunpack.c.l.b16 %v177
    %v677 = vunpack.c.h.b16 %v177
    %v678 = vunpack.c.l.b16 %v178
    %v679 = vunpack.c.h.b16 %v178
    %v680 = vunpack.c.l.b16 %v179
    %v681 = vunpack.c.h.b16 %v179
    %v682 = vunpack.c.l.b16 %v180
    %v683 = vunpack.c.h.b16 %v180
    %v684 = vunpack.c.l.b16 %v181
    %v685 = vunpack.c.h.b16 %v181
    %v686 = vunpack.c.l.b16 %v182
    %v687 = vunpack.c.h.b16 %v182
    %v688 = vunpack.c.l.b16 %v183
    %v689 = vunpack.c.h.b16 %v183
    %v690 = vunpack.c.l.b16 %v184
    %v691 = vunpack.c.h.b16 %v184
    %v692 = vunpack.c.l.b16 %v185
    %v693 = vunpack.c.h.b16 %v185
    %v694 = vunpack.c.l.b16 %v186
    %v695 = vunpack.c.h.b16 %v186
    %v696 = vunpack.c.l.b16 %v187
    %v697 = vunpack.c.h.b16 %v187
    %v698 = vunpack.c.l.b16 %v188
    %v699 = vunpack.c.h.b16 %v188
    %v700 = vunpack.c.l.b16 %v189
    %v701 = vunpack.c.h.b16 %v189
    %v702 = vunpack.c.l.b16 %v190
    %v703 = vunpack.c.h.b16 %v190
    %v704 = vunpack.c.l.b16 %v191
    %v705 = vunpack.c.h.b16 %v191
    %v706 = vunpack.c.l.b16 %v192
    %v707 = vunpack.c.h.b16 %v192
    %v708 = vunpack.c.l.b16 %v193
    %v709 = vunpack.c.h.b16 %v193
    %v710 = vunpack.c.l.b16 %v194
    %v711 = vunpack.c.h.b16 %v194
    %v712 = vunpack.c.l.b16 %v195
    %v713 = vunpack.c.h.b16 %v195
    %v714 = vunpack.c.l.b16 %v196
    %v715 = vunpack.c.h.b16 %v196
    %v716 = vunpack.c.l.b16 %v197
    %v717 = vunpack.c.h.b16 %v197
    %v718 = vunpack.c.l.b16 %v198
    %v719 = vunpack.c.h.b16 %v198
    %v720 = vunpack.c.l.b16 %v199
    %v721 = vunpack.c.h.b16 %v199
    %v722 = vunpack.c.l.b16 %v200
    %v723 = vunpack.c.h.b16 %v200
    %v724 = vunpack.c.l.b16 %v201
    %v725 = vunpack.c.h.b16 %v201
    %v726 = vunpack.c.l.b16 %v202
    %v727 = vunpack.c.h.b16 %v202
    %v728 = vunpack.c.l.b16 %v203
    %v729 = vunpack.c.h.b16 %v203
    %v730 = vunpack.c.l.b16 %v204
    %v731 = vunpack.c.h.b16 %v204
    %v732 = vunpack.c.l.b16 %v205
    %v733 = vunpack.c.h.b16 %v205
    %v734 = vunpack.c.l.b16 %v206
    %v735 = vunpack.c.h.b16 %v206
    %v736 = vunpack.c.l.b16 %v207
    %v737 = vunpack.c.h.b16 %v207
    %v738 = vunpack.c.l.b16 %v208
    %v739 = vunpack.c.h.b16 %v208
    %v740 = vunpack.c.l.b16 %v209
    %v741 = vunpack.c.h.b16 %v209
    %v742 = vunpack.c.l.b16 %v210
    %v743 = vunpack.c.h.b16 %v210
    %v744 = vunpack.c.l.b16 %v211
    %v745 = vunpack.c.h.b16 %v211
    %v746 = vunpack.c.l.b16 %v212
    %v747 = vunpack.c.h.b16 %v212
    %v748 = vunpack.c.l.b16 %v213
    %v749 = vunpack.c.h.b16 %v213
    %v750 = vunpack.c.l.b16 %v214
    %v751 = vunpack.c.h.b16 %v214
    %v752 = vunpack.c.l.b16 %v215
    %v753 = vunpack.c.h.b16 %v215
    %v754 = vunpack.c.l.b16 %v216
    %v755 = vunpack.c.h.b16 %v216
    %v756 = vunpack.c.l.b16 %v217
    %v757 = vunpack.c.h.b16 %v217
    %v758 = vunpack.c.l.b16 %v218
    %v759 = vunpack.c.h.b16 %v218
    %v760 = vunpack.c.l.b16 %v219
    %v761 = vunpack.c.h.b16 %v219
    %v762 = vunpack.c.l.b16 %v220
    %v763 = vunpack.c.h.b16 %v220
    %v764 = vunpack.c.l.b16 %v221
    %v765 = vunpack.c.h.b16 %v221
    %v766 = vunpack.c.l.b16 %v222
    %v767 = vunpack.c.h.b16 %v222
    %v768 = vunpack.c.l.b16 %v223
    %v769 = vunpack.c.h.b16 %v223
    %v770 = vunpack.c.l.b16 %v224
    %v771 = vunpack.c.h.b16 %v224
    %v772 = vunpack.c.l.b16 %v225
    %v773 = vunpack.c.h.b16 %v225
    %v774 = vunpack.c.l.b16 %v226
    %v775 = vunpack.c.h.b16 %v226
    %v776 = vunpack.c.l.b16 %v227
    %v777 = vunpack.c.h.b16 %v227
    %v778 = vunpack.c.l.b16 %v228
    %v779 = vunpack.c.h.b16 %v228
    %v780 = vunpack.c.l.b16 %v229
    %v781 = vunpack.c.h.b16 %v229
    %v782 = vunpack.c.l.b16 %v230
    %v783 = vunpack.c.h.b16 %v230
    %v784 = vunpack.c.l.b16 %v231
    %v785 = vunpack.c.h.b16 %v231
    %v786 = vunpack.c.l.b16 %v232
    %v787 = vunpack.c.h.b16 %v232
    %v788 = vunpack.c.l.b16 %v233
    %v789 = vunpack.c.h.b16 %v233
    %v790 = vunpack.c.l.b16 %v234
    %v791 = vunpack.c.h.b16 %v234
    %v792 = vunpack.c.l.b16 %v235
    %v793 = vunpack.c.h.b16 %v235
    %v794 = vunpack.c.l.b16 %v236
    %v795 = vunpack.c.h.b16 %v236
    %v796 = vunpack.c.l.b16 %v237
    %v797 = vunpack.c.h.b16 %v237
    %v798 = vunpack.c.l.b16 %v238
    %v799 = vunpack.c.h.b16 %v238
    %v800 = vunpack.c.l.b16 %v239
    %v801 = vunpack.c.h.b16 %v239
    %v802 = vunpack.c.l.b16 %v240
    %v803 = vunpack.c.h.b16 %v240
    %v804 = vunpack.c.l.b16 %v241
    %v805 = vunpack.c.h.b16 %v241
    %v806 = vunpack.c.l.b16 %v242
    %v807 = vunpack.c.h.b16 %v242
    %v808 = vunpack.c.l.b16 %v243
    %v809 = vunpack.c.h.b16 %v243
    %v810 = vunpack.c.l.b16 %v244
    %v811 = vunpack.c.h.b16 %v244
    %v812 = vunpack.c.l.b16 %v245
    %v813 = vunpack.c.h.b16 %v245
    %v814 = vunpack.c.l.b16 %v246
    %v815 = vunpack.c.h.b16 %v246
    %v816 = vunpack.c.l.b16 %v247
    %v817 = vunpack.c.h.b16 %v247
    %v818 = vunpack.c.l.b16 %v248
    %v819 = vunpack.c.h.b16 %v248
    %v820 = vunpack.c.l.b16 %v249
    %v821 = vunpack.c.h.b16 %v249
    %v822 = vunpack.c.l.b16 %v250
    %v823 = vunpack.c.h.b16 %v250
    %v824 = vunpack.c.l.b16 %v251
    %v825 = vunpack.c.h.b16 %v251
    %v826 = vunpack.c.l.b16 %v252
    %v827 = vunpack.c.h.b16 %v252
    %v828 = vunpack.c.l.b16 %v253
    %v829 = vunpack.c.h.b16 %v253
    %v830 = vunpack.c.l.b16 %v254
    %v831 = vunpack.c.h.b16 %v254
    %v832 = vunpack.c.l.b16 %v255
    %v833 = vunpack.c.h.b16 %v255
    %v834 = vunpack.c.l.b16 %v256
    %v835 = vunpack.c.h.b16 %v256
    %v836 = vunpack.c.l.b16 %v257
    %v837 = vunpack.c.h.b16 %v257
    %v838 = vunpack.c.l.b16 %v258
    %v839 = vunpack.c.h.b16 %v258
    %v840 = vunpack.c.l.b16 %v259
    %v841 = vunpack.c.h.b16 %v259
    %v842 = vunpack.c.l.b16 %v260
    %v843 = vunpack.c.h.b16 %v260
    %v844 = vunpack.c.l.b16 %v261
    %v845 = vunpack.c.h.b16 %v261
    %v846 = vunpack.c.l.b16 %v262
    %v847 = vunpack.c.h.b16 %v262
    %v848 = vunpack.c.l.b16 %v263
    %v849 = vunpack.c.h.b16 %v263
    %v850 = vunpack.c.l.b16 %v264
    %v851 = vunpack.c.h.b16 %v264
    %v852 = vunpack.c.l.b16 %v265
    %v853 = vunpack.c.h.b16 %v265
    %v854 = vunpack.c.l.b16 %v266
    %v855 = vunpack.c.h.b16 %v266
    %v856 = vunpack.c.l.b16 %v267
    %v857 = vunpack.c.h.b16 %v267
    %v858 = vunpack.c.l.b16 %v268
    %v859 = vunpack.c.h.b16 %v268
    %v860 = vunpack.c.l.b16 %v269
    %v861 = vunpack.c.h.b16 %v269
    %v862 = vunpack.c.l.b16 %v270
    %v863 = vunpack.c.h.b16 %v270
    %v864 = vunpack.c.l.b16 %v271
    %v865 = vunpack.c.h.b16 %v271
    %v866 = vunpack.c.l.b16 %v272
    %v867 = vunpack.c.h.b16 %v272
    %v868 = vunpack.c.l.b16 %v273
    %v869 = vunpack.c.h.b16 %v273
    %v870 = vunpack.c.l.b16 %v274
    %v871 = vunpack.c.h.b16 %v274
    %v872 = vunpack.c.l.b16 %v275
    %v873 = vunpack.c.h.b16 %v275
    %v874 = vunpack.c.l.b16 %v276
    %v875 = vunpack.c.h.b16 %v276
    %v876 = vunpack.c.l.b16 %v277
    %v877 = vunpack.c.h.b16 %v277
    %v878 = vunpack.c.l.b16 %v278
    %v879 = vunpack.c.h.b16 %v278
    %v880 = vunpack.c.l.b16 %v279
    %v881 = vunpack.c.h.b16 %v279
    %v882 = vunpack.c.l.b16 %v280
    %v883 = vunpack.c.h.b16 %v280
    %v884 = vunpack.c.l.b16 %v281
    %v885 = vunpack.c.h.b16 %v281
    %v886 = vunpack.c.l.b16 %v282
    %v887 = vunpack.c.h.b16 %v282
    %v888 = vunpack.c.l.b16 %v283
    %v889 = vunpack.c.h.b16 %v283
    %v890 = vunpack.c.l.b16 %v284
    %v891 = vunpack.c.h.b16 %v284
    %v892 = vunpack.c.l.b16 %v285
    %v893 = vunpack.c.h.b16 %v285
    %v894 = vunpack.c.l.b16 %v286
    %v895 = vunpack.c.h.b16 %v286
    %v896 = vunpack.c.l.b16 %v287
    %v897 = vunpack.c.h.b16 %v287
    %v898 = vunpack.c.l.b16 %v288
    %v899 = vunpack.c.h.b16 %v288
    %v900 = vunpack.c.l.b16 %v289
    %v901 = vunpack.c.h.b16 %v289
    %v902 = vunpack.c.l.b16 %v290
    %v903 = vunpack.c.h.b16 %v290
    %v904 = vunpack.c.l.b16 %v291
    %v905 = vunpack.c.h.b16 %v291
    %v906 = vunpack.c.l.b16 %v292
    %v907 = vunpack.c.h.b16 %v292
    %v908 = vunpack.c.l.b16 %v293
    %v909 = vunpack.c.h.b16 %v293
    %v910 = vunpack.c.l.b16 %v294
    %v911 = vunpack.c.h.b16 %v294
    %v912 = vunpack.c.l.b16 %v295
    %v913 = vunpack.c.h.b16 %v295
    %v914 = vunpack.c.l.b16 %v296
    %v915 = vunpack.c.h.b16 %v296
    %v916 = vunpack.c.l.b16 %v297
    %v917 = vunpack.c.h.b16 %v297
    %v918 = vunpack.c.l.b16 %v298
    %v919 = vunpack.c.h.b16 %v298
    %v920 = vunpack.c.l.b16 %v299
    %v921 = vunpack.c.h.b16 %v299
    %v922 = vunpack.c.l.b16 %v300
    %v923 = vunpack.c.h.b16 %v300
    %v924 = vunpack.c.l.b16 %v301
    %v925 = vunpack.c.h.b16 %v301
    %v926 = vunpack.c.l.b16 %v302
    %v927 = vunpack.c.h.b16 %v302
    %v928 = vunpack.c.l.b16 %v303
    %v929 = vunpack.c.h.b16 %v303
    %v930 = vunpack.c.l.b16 %v304
    %v931 = vunpack.c.h.b16 %v304
    %v932 = vunpack.c.l.b16 %v305
    %v933 = vunpack.c.h.b16 %v305
    %v934 = vunpack.c.l.b16 %v306
    %v935 = vunpack.c.h.b16 %v306
    %v936 = vunpack.c.l.b16 %v307
    %v937 = vunpack.c.h.b16 %v307
    %v938 = vunpack.c.l.b16 %v308
    %v939 = vunpack.c.h.b16 %v308
    %v940 = vunpack.c.l.b16 %v309
    %v941 = vunpack.c.h.b16 %v309
    %v942 = vunpack.c.l.b16 %v310
    %v943 = vunpack.c.h.b16 %v310
    %v944 = vunpack.c.l.b16 %v311
    %v945 = vunpack.c.h.b16 %v311
    %v946 = vpack.c.b16 %v558, %v554
    %v947 = vpack.c.b16 %v559, %v555
    %v948 = vpack.c.b16 %v560, %v556
    %v949 = vpack.c.b16 %v561, %v557
    %v950 = vpack.c.b16 %v566, %v562
    %v951 = vpack.c.b16 %v567, %v563
    %v952 = vpack.c.b16 %v568, %v564
    %v953 = vpack.c.b16 %v569, %v565
    %v954 = vpack.c.b16 %v574, %v570
    %v955 = vpack.c.b16 %v575, %v571
    %v956 = vpack.c.b16 %v576, %v572
    %v957 = vpack.c.b16 %v577, %v573
    %v958 = vpack.c.b16 %v582, %v578
    %v959 = vpack.c.b16 %v583, %v579
    %v960 = vpack.c.b16 %v584, %v580
    %v961 = vpack.c.b16 %v585, %v581
    %v962 = vpack.c.b16 %v590, %v586
    %v963 = vpack.c.b16 %v591, %v587
    %v964 = vpack.c.b16 %v592, %v588
    %v965 = vpack.c.b16 %v593, %v589
    %v966 = vpack.c.b16 %v598, %v594
    %v967 = vpack.c.b16 %v599, %v595
    %v968 = vpack.c.b16 %v600, %v596
    %v969 = vpack.c.b16 %v601, %v597
    %v970 = vpack.c.b16 %v606, %v602
    %v971 = vpack.c.b16 %v607, %v603
    %v972 = vpack.c.b16 %v608, %v604
    %v973 = vpack.c.b16 %v609, %v605
    %v974 = vpack.c.b16 %v614, %v610
    %v975 = vpack.c.b16 %v615, %v611
    %v976 = vpack.c.b16 %v616, %v612
    %v977 = vpack.c.b16 %v617, %v613
    %v978 = vpack.c.b16 %v622, %v618
    %v979 = vpack.c.b16 %v623, %v619
    %v980 = vpack.c.b16 %v624, %v620
    %v981 = vpack.c.b16 %v625, %v621
    %v982 = vpack.c.b16 %v630, %v626
    %v983 = vpack.c.b16 %v631, %v627
    %v984 = vpack.c.b16 %v632, %v628
    %v985 = vpack.c.b16 %v633, %v629
    %v986 = vpack.c.b16 %v638, %v634
    %v987 = vpack.c.b16 %v639, %v635
    %v988 = vpack.c.b16 %v640, %v636
    %v989 = vpack.c.b16 %v641, %v637
    %v990 = vpack.c.b16 %v646, %v642
    %v991 = vpack.c.b16 %v647, %v643
    %v992 = vpack.c.b16 %v648, %v644
    %v993 = vpack.c.b16 %v649, %v645
    %v994 = vpack.c.b16 %v654, %v650
    %v995 = vpack.c.b16 %v655, %v651
    %v996 = vpack.c.b16 %v656, %v652
    %v997 = vpack.c.b16 %v657, %v653
    %v998 = vpack.c.b16 %v662, %v658
    %v999 = vpack.c.b16 %v663, %v659
    %v1000 = vpack.c.b16 %v664, %v660
    %v1001 = vpack.c.b16 %v665, %v661
    %v1002 = vpack.c.b16 %v670, %v666
    %v1003 = vpack.c.b16 %v671, %v667
    %v1004 = vpack.c.b16 %v672, %v668
    %v1005 = vpack.c.b16 %v673, %v669
    %v1006 = vpack.c.b16 %v678, %v674
    %v1007 = vpack.c.b16 %v679, %v675
    %v1008 = vpack.c.b16 %v680, %v676
    %v1009 = vpack.c.b16 %v681, %v677
    %v1010 = vpack.c.b16 %v686, %v682
    %v1011 = vpack.c.b16 %v687, %v683
    %v1012 = vpack.c.b16 %v688, %v684
    %v1013 = vpack.c.b16 %v689, %v685
    %v1014 = vpack.c.b16 %v694, %v690
    %v1015 = vpack.c.b16 %v695, %v691
    %v1016 = vpack.c.b16 %v696, %v692
    %v1017 = vpack.c.b16 %v697, %v693
    %v1018 = vpack.c.b16 %v702, %v698
    %v1019 = vpack.c.b16 %v703, %v699
    %v1020 = vpack.c.b16 %v704, %v700
    %v1021 = vpack.c.b16 %v705, %v701
    %v1022 = vpack.c.b16 %v710, %v706
    %v1023 = vpack.c.b16 %v711, %v707
    %v1024 = vpack.c.b16 %v712, %v708
    %v1025 = vpack.c.b16 %v713, %v709
    %v1026 = vpack.c.b16 %v718, %v714
    %v1027 = vpack.c.b16 %v719, %v715
    %v1028 = vpack.c.b16 %v720, %v716
    %v1029 = vpack.c.b16 %v721, %v717
    %v1030 = vpack.c.b16 %v726, %v722
    %v1031 = vpack.c.b16 %v727, %v723
    %v1032 = vpack.c.b16 %v728, %v724
    %v1033 = vpack.c.b16 %v729, %v725
    %v1034 = vpack.c.b16 %v734, %v730
    %v1035 = vpack.c.b16 %v735, %v731
    %v1036 = vpack.c.b16 %v736, %v732
    %v1037 = vpack.c.b16 %v737, %v733
    %v1038 = vpack.c.b16 %v742, %v738
    %v1039 = vpack.c.b16 %v743, %v739
    %v1040 = vpack.c.b16 %v744, %v740
    %v1041 = vpack.c.b16 %v745, %v741
    %v1042 = vpack.c.b16 %v750, %v746
    %v1043 = vpack.c.b16 %v751, %v747
    %v1044 = vpack.c.b16 %v752, %v748
    %v1045 = vpack.c.b16 %v753, %v749
    %v1046 = vpack.c.b16 %v758, %v754
    %v1047 = vpack.c.b16 %v759, %v755
    %v1048 = vpack.c.b16 %v760, %v756
    %v1049 = vpack.c.b16 %v761, %v757
    %v1050 = vpack.c.b16 %v766, %v762
    %v1051 = vpack.c.b16 %v767, %v763
    %v1052 = vpack.c.b16 %v768, %v764
    %v1053 = vpack.c.b16 %v769, %v765
    %v1054 = vpack.c.b16 %v774, %v770
    %v1055 = vpack.c.b16 %v775, %v771
    %v1056 = vpack.c.b16 %v776, %v772
    %v1057 = vpack.c.b16 %v777, %v773
    %v1058 = vpack.c.b16 %v782, %v778
    %v1059 = vpack.c.b16 %v783, %v779
    %v1060 = vpack.c.b16 %v784, %v780
    %v1061 = vpack.c.b16 %v785, %v781
    %v1062 = vpack.c.b16 %v790, %v786
    %v1063 = vpack.c.b16 %v791, %v787
    %v1064 = vpack.c.b16 %v792, %v788
    %v1065 = vpack.c.b16 %v793, %v789
    %v1066 = vpack.c.b16 %v798, %v794
    %v1067 = vpack.c.b16 %v799, %v795
    %v1068 = vpack.c.b16 %v800, %v796
    %v1069 = vpack.c.b16 %v801, %v797
    %v1070 = vpack.c.b16 %v806, %v802
    %v1071 = vpack.c.b16 %v807, %v803
    %v1072 = vpack.c.b16 %v808, %v804
    %v1073 = vpack.c.b16 %v809, %v805
    %v1074 = vpack.c.b16 %v814, %v810
    %v1075 = vpack.c.b16 %v815, %v811
    %v1076 = vpack.c.b16 %v816, %v812
    %v1077 = vpack.c.b16 %v817, %v813
    %v1078 = vpack.c.b16 %v822, %v818
    %v1079 = vpack.c.b16 %v823, %v819
    %v1080 = vpack.c.b16 %v824, %v820
    %v1081 = vpack.c.b16 %v825, %v821
    %v1082 = vpack.c.b16 %v830, %v826
    %v1083 = vpack.c.b16 %v831, %v827
    %v1084 = vpack.c.b16 %v832, %v828
    %v1085 = vpack.c.b16 %v833, %v829
    %v1086 = vpack.c.b16 %v838, %v834
    %v1087 = vpack.c.b16 %v839, %v835
    %v1088 = vpack.c.b16 %v840, %v836
    %v1089 = vpack.c.b16 %v841, %v837
    %v1090 = vpack.c.b16 %v846, %v842
    %v1091 = vpack.c.b16 %v847, %v843
    %v1092 = vpack.c.b16 %v848, %v844
    %v1093 = vpack.c.b16 %v849, %v845
    %v1094 = vpack.c.b16 %v854, %v850
    %v1095 = vpack.c.b16 %v855, %v851
    %v1096 = vpack.c.b16 %v856, %v852
    %v1097 = vpack.c.b16 %v857, %v853
    %v1098 = vpack.c.b16 %v862, %v858
    %v1099 = vpack.c.b16 %v863, %v859
    %v1100 = vpack.c.b16 %v864, %v860
    %v1101 = vpack.c.b16 %v865, %v861
    %v1102 = vpack.c.b16 %v870, %v866
    %v1103 = vpack.c.b16 %v871, %v867
    %v1104 = vpack.c.b16 %v872, %v868
    %v1105 = vpack.c.b16 %v873, %v869
    %v1106 = vpack.c.b16 %v878, %v874
    %v1107 = vpack.c.b16 %v879, %v875
    %v1108 = vpack.c.b16 %v880, %v876
    %v1109 = vpack.c.b16 %v881, %v877
    %v1110 = vpack.c.b16 %v886, %v882
    %v1111 = vpack.c.b16 %v887, %v883
    %v1112 = vpack.c.b16 %v888, %v884
    %v1113 = vpack.c.b16 %v889, %v885
    %v1114 = vpack.c.b16 %v894, %v890
    %v1115 = vpack.c.b16 %v895, %v891
    %v1116 = vpack.c.b16 %v896, %v892
    %v1117 = vpack.c.b16 %v897, %v893
    %v1118 = vpack.c.b16 %v902, %v898
    %v1119 = vpack.c.b16 %v903, %v899
    %v1120 = vpack.c.b16 %v904, %v900
    %v1121 = vpack.c.b16 %v905, %v901
    %v1122 = vpack.c.b16 %v910, %v906
    %v1123 = vpack.c.b16 %v911, %v907
    %v1124 = vpack.c.b16 %v912, %v908
    %v1125 = vpack.c.b16 %v913, %v909
    %v1126 = vpack.c.b16 %v918, %v914
    %v1127 = vpack.c.b16 %v919, %v915
    %v1128 = vpack.c.b16 %v920, %v916
    %v1129 = vpack.c.b16 %v921, %v917
    %v1130 = vpack.c.b16 %v926, %v922
    %v1131 = vpack.c.b16 %v927, %v923
    %v1132 = vpack.c.b16 %v928, %v924
    %v1133 = vpack.c.b16 %v929, %v925
    %v1134 = vpack.c.b16 %v934, %v930
    %v1135 = vpack.c.b16 %v935, %v931
    %v1136 = vpack.c.b16 %v936, %v932
    %v1137 = vpack.c.b16 %v937, %v933
    %v1138 = vpack.c.b16 %v942, %v938
    %v1139 = vpack.c.b16 %v943, %v939
    %v1140 = vpack.c.b16 %v944, %v940
    %v1141 = vpack.c.b16 %v945, %v941
    %vm1338 = vcmask 130048
    %v1340 = vsel %vm1338, %v351, 0
    %1342 = vmatprep.subr.bf16.mxu0 %v975
    %1343 = vmatpush1.bf16.msra.mxu0 %v974
    %1344 = vmatprep.subr.bf16.mxu0 %v971
    %1345 = vmatpush1.bf16.msra.mxu0 %v970
    %1346 = vmatprep.subr.bf16.mxu0 %v967
    %1347 = vmatpush1.bf16.msra.mxu0 %v966
    %1348 = vmatprep.subr.bf16.mxu0 %v963
    %1349 = vmatpush1.bf16.msra.mxu0 %v962
    %1350 = vmatprep.subr.bf16.mxu0 %v959
    %1351 = vmatpush1.bf16.msra.mxu0 %v958
    %1352 = vmatprep.subr.bf16.mxu0 %v955
    %1353 = vmatpush1.bf16.msra.mxu0 %v954
    %1354 = vmatprep.subr.bf16.mxu0 %v951
    %1355 = vmatpush1.bf16.msra.mxu0 %v950
    %1356 = vmatprep.subr.bf16.mxu0 %v947
    %1357 = vmatpush1.bf16.msra.mxu0 %v946
    %1358 = vmatprep.subr.bf16.mxu0 %v1007
    %1359 = vmatpush2.bf16.msra.mxu0 %v1006
    %1360 = vmatprep.subr.bf16.mxu0 %v1003
    %1361 = vmatpush2.bf16.msra.mxu0 %v1002
    %1362 = vmatprep.subr.bf16.mxu0 %v999
    %1363 = vmatpush2.bf16.msra.mxu0 %v998
    %1364 = vmatprep.subr.bf16.mxu0 %v995
    %1365 = vmatpush2.bf16.msra.mxu0 %v994
    %1366 = vmatprep.subr.bf16.mxu0 %v991
    %1367 = vmatpush2.bf16.msra.mxu0 %v990
    %1368 = vmatprep.subr.bf16.mxu0 %v987
    %1369 = vmatpush2.bf16.msra.mxu0 %v986
    %1370 = vmatprep.subr.bf16.mxu0 %v983
    %1371 = vmatpush2.bf16.msra.mxu0 %v982
    %1372 = vmatprep.subr.bf16.mxu0 %v979
    %1373 = vmatpush2.bf16.msra.mxu0 %v978
    %1374 = vmatprep.mubr.bf16.mxu0 %v346
    %1375 = vmatmul.mubr.bf16.gmra.mxu0 %v345
    %v1376 = vpop.f32.mrf.mxu0
    %v1377 = vadd.f32 %v317, %v1376
    %v1378 = vpop.f32.mrf.mxu0
    %v1379 = vadd.f32 %v321, %v1378
    %v1380 = vpop.f32.mrf.mxu0
    %v1381 = vpop.f32.mrf.mxu0
    %1382 = vdwg.mxu0
    %1383 = vmatprep.subr.bf16.mxu0 %v1039
    %1384 = vmatpush1.bf16.msra.mxu0 %v1038
    %1385 = vmatprep.subr.bf16.mxu0 %v1035
    %1386 = vmatpush1.bf16.msra.mxu0 %v1034
    %1387 = vmatprep.subr.bf16.mxu0 %v1031
    %1388 = vmatpush1.bf16.msra.mxu0 %v1030
    %1389 = vmatprep.subr.bf16.mxu0 %v1027
    %1390 = vmatpush1.bf16.msra.mxu0 %v1026
    %1391 = vmatprep.subr.bf16.mxu0 %v1023
    %1392 = vmatpush1.bf16.msra.mxu0 %v1022
    %1393 = vmatprep.subr.bf16.mxu0 %v1019
    %1394 = vmatpush1.bf16.msra.mxu0 %v1018
    %1395 = vmatprep.subr.bf16.mxu0 %v1015
    %1396 = vmatpush1.bf16.msra.mxu0 %v1014
    %1397 = vmatprep.subr.bf16.mxu0 %v1011
    %1398 = vmatpush1.bf16.msra.mxu0 %v1010
    %1399 = vmatprep.subr.bf16.mxu0 %v1071
    %1400 = vmatpush2.bf16.msra.mxu0 %v1070
    %1401 = vmatprep.subr.bf16.mxu0 %v1067
    %1402 = vmatpush2.bf16.msra.mxu0 %v1066
    %1403 = vmatprep.subr.bf16.mxu0 %v1063
    %1404 = vmatpush2.bf16.msra.mxu0 %v1062
    %1405 = vmatprep.subr.bf16.mxu0 %v1059
    %1406 = vmatpush2.bf16.msra.mxu0 %v1058
    %1407 = vmatprep.subr.bf16.mxu0 %v1055
    %1408 = vmatpush2.bf16.msra.mxu0 %v1054
    %1409 = vmatprep.subr.bf16.mxu0 %v1051
    %1410 = vmatpush2.bf16.msra.mxu0 %v1050
    %1411 = vmatprep.subr.bf16.mxu0 %v1047
    %1412 = vmatpush2.bf16.msra.mxu0 %v1046
    %1413 = vmatprep.subr.bf16.mxu0 %v1043
    %1414 = vmatpush2.bf16.msra.mxu0 %v1042
    %1415 = vmatprep.mubr.bf16.mxu0 %v348
    %1416 = vmatmul.mubr.bf16.gmra.mxu0 %v347
    %v1417 = vpop.f32.mrf.mxu0
    %v1418 = vadd.f32 %v1377, %v1417
    %v1419 = vpop.f32.mrf.mxu0
    %v1420 = vadd.f32 %v1379, %v1419
    %v1421 = vpop.f32.mrf.mxu0
    %v1422 = vpop.f32.mrf.mxu0
    %1423 = vdwg.mxu0
    %1424 = vmatprep.subr.bf16.mxu0 %v1103
    %1425 = vmatpush1.bf16.msra.mxu0 %v1102
    %1426 = vmatprep.subr.bf16.mxu0 %v1099
    %1427 = vmatpush1.bf16.msra.mxu0 %v1098
    %1428 = vmatprep.subr.bf16.mxu0 %v1095
    %1429 = vmatpush1.bf16.msra.mxu0 %v1094
    %1430 = vmatprep.subr.bf16.mxu0 %v1091
    %1431 = vmatpush1.bf16.msra.mxu0 %v1090
    %1432 = vmatprep.subr.bf16.mxu0 %v1087
    %1433 = vmatpush1.bf16.msra.mxu0 %v1086
    %1434 = vmatprep.subr.bf16.mxu0 %v1083
    %1435 = vmatpush1.bf16.msra.mxu0 %v1082
    %1436 = vmatprep.subr.bf16.mxu0 %v1079
    %1437 = vmatpush1.bf16.msra.mxu0 %v1078
    %1438 = vmatprep.subr.bf16.mxu0 %v1075
    %1439 = vmatpush1.bf16.msra.mxu0 %v1074
    %1440 = vmatprep.subr.bf16.mxu0 %v1135
    %1441 = vmatpush2.bf16.msra.mxu0 %v1134
    %1442 = vmatprep.subr.bf16.mxu0 %v1131
    %1443 = vmatpush2.bf16.msra.mxu0 %v1130
    %1444 = vmatprep.subr.bf16.mxu0 %v1127
    %1445 = vmatpush2.bf16.msra.mxu0 %v1126
    %1446 = vmatprep.subr.bf16.mxu0 %v1123
    %1447 = vmatpush2.bf16.msra.mxu0 %v1122
    %1448 = vmatprep.subr.bf16.mxu0 %v1119
    %1449 = vmatpush2.bf16.msra.mxu0 %v1118
    %1450 = vmatprep.subr.bf16.mxu0 %v1115
    %1451 = vmatpush2.bf16.msra.mxu0 %v1114
    %1452 = vmatprep.subr.bf16.mxu0 %v1111
    %1453 = vmatpush2.bf16.msra.mxu0 %v1110
    %1454 = vmatprep.subr.bf16.mxu0 %v1107
    %1455 = vmatpush2.bf16.msra.mxu0 %v1106
    %1456 = vmatprep.mubr.bf16.mxu0 %v350
    %1457 = vmatmul.mubr.bf16.gmra.mxu0 %v349
    %v1458 = vpop.f32.mrf.mxu0
    %v1459 = vadd.f32 %v1418, %v1458
    %v1460 = vpop.f32.mrf.mxu0
    %v1461 = vadd.f32 %v1420, %v1460
    %v1462 = vpop.f32.mrf.mxu0
    %v1463 = vpop.f32.mrf.mxu0
    %1464 = vdwg.mxu0
    %1465 = vmatprep.subr.bf16.mxu0 0
    %1466 = vmatpush1.bf16.msra.mxu0 0
    %1467 = vmatprep.subr.bf16.mxu0 0
    %1468 = vmatpush1.bf16.msra.mxu0 0
    %1469 = vmatprep.subr.bf16.mxu0 0
    %1470 = vmatpush1.bf16.msra.mxu0 0
    %1471 = vmatprep.subr.bf16.mxu0 0
    %1472 = vmatpush1.bf16.msra.mxu0 0
    %1473 = vmatprep.subr.bf16.mxu0 0
    %1474 = vmatpush1.bf16.msra.mxu0 0
    %1475 = vmatprep.subr.bf16.mxu0 0
    %1476 = vmatpush1.bf16.msra.mxu0 0
    %1477 = vmatprep.subr.bf16.mxu0 0
    %1478 = vmatpush1.bf16.msra.mxu0 0
    %1479 = vmatprep.subr.bf16.mxu0 %v1139
    %1480 = vmatpush1.bf16.msra.mxu0 %v1138
    %1481 = vmatprep.subr.bf16.mxu0 0
    %1482 = vmatpush2.bf16.msra.mxu0 0
    %1483 = vmatprep.subr.bf16.mxu0 0
    %1484 = vmatpush2.bf16.msra.mxu0 0
    %1485 = vmatprep.subr.bf16.mxu0 0
    %1486 = vmatpush2.bf16.msra.mxu0 0
    %1487 = vmatprep.subr.bf16.mxu0 0
    %1488 = vmatpush2.bf16.msra.mxu0 0
    %1489 = vmatprep.subr.bf16.mxu0 0
    %1490 = vmatpush2.bf16.msra.mxu0 0
    %1491 = vmatprep.subr.bf16.mxu0 0
    %1492 = vmatpush2.bf16.msra.mxu0 0
    %1493 = vmatprep.subr.bf16.mxu0 0
    %1494 = vmatpush2.bf16.msra.mxu0 0
    %1495 = vmatprep.subr.bf16.mxu0 0
    %1496 = vmatpush2.bf16.msra.mxu0 0
    %1497 = vmatprep.mubr.bf16.mxu0 0
    %1498 = vmatmul.mubr.bf16.gmra.mxu0 %v1340
    %v1499 = vpop.f32.mrf.mxu0
    %v1500 = vadd.f32 %v1459, %v1499
    %v1501 = vpop.f32.mrf.mxu0
    %v1502 = vadd.f32 %v1461, %v1501
    %v1503 = vpop.f32.mrf.mxu0
    %v1504 = vpop.f32.mrf.mxu0
    %1505 = vdwg.mxu0
    %1506 = vmatprep.subr.bf16.mxu0 %v977
    %1507 = vmatpush1.bf16.msra.mxu0 %v976
    %1508 = vmatprep.subr.bf16.mxu0 %v973
    %1509 = vmatpush1.bf16.msra.mxu0 %v972
    %1510 = vmatprep.subr.bf16.mxu0 %v969
    %1511 = vmatpush1.bf16.msra.mxu0 %v968
    %1512 = vmatprep.subr.bf16.mxu0 %v965
    %1513 = vmatpush1.bf16.msra.mxu0 %v964
    %1514 = vmatprep.subr.bf16.mxu0 %v961
    %1515 = vmatpush1.bf16.msra.mxu0 %v960
    %1516 = vmatprep.subr.bf16.mxu0 %v957
    %1517 = vmatpush1.bf16.msra.mxu0 %v956
    %1518 = vmatprep.subr.bf16.mxu0 %v953
    %1519 = vmatpush1.bf16.msra.mxu0 %v952
    %1520 = vmatprep.subr.bf16.mxu0 %v949
    %1521 = vmatpush1.bf16.msra.mxu0 %v948
    %1522 = vmatprep.subr.bf16.mxu0 %v1009
    %1523 = vmatpush2.bf16.msra.mxu0 %v1008
    %1524 = vmatprep.subr.bf16.mxu0 %v1005
    %1525 = vmatpush2.bf16.msra.mxu0 %v1004
    %1526 = vmatprep.subr.bf16.mxu0 %v1001
    %1527 = vmatpush2.bf16.msra.mxu0 %v1000
    %1528 = vmatprep.subr.bf16.mxu0 %v997
    %1529 = vmatpush2.bf16.msra.mxu0 %v996
    %1530 = vmatprep.subr.bf16.mxu0 %v993
    %1531 = vmatpush2.bf16.msra.mxu0 %v992
    %1532 = vmatprep.subr.bf16.mxu0 %v989
    %1533 = vmatpush2.bf16.msra.mxu0 %v988
    %1534 = vmatprep.subr.bf16.mxu0 %v985
    %1535 = vmatpush2.bf16.msra.mxu0 %v984
    %1536 = vmatprep.subr.bf16.mxu0 %v981
    %1537 = vmatpush2.bf16.msra.mxu0 %v980
    %1538 = vmatprep.mubr.bf16.mxu0 %v346
    %1539 = vmatmul.mubr.bf16.gmra.mxu0 %v345
    %v1540 = vpop.f32.mrf.mxu0
    %v1541 = vadd.f32 %v325, %v1540
    %v1542 = vpop.f32.mrf.mxu0
    %v1543 = vadd.f32 %v329, %v1542
    %v1544 = vpop.f32.mrf.mxu0
    %v1545 = vpop.f32.mrf.mxu0
    %1546 = vdwg.mxu0
    %1547 = vmatprep.subr.bf16.mxu0 %v1041
    %1548 = vmatpush1.bf16.msra.mxu0 %v1040
    %1549 = vmatprep.subr.bf16.mxu0 %v1037
    %1550 = vmatpush1.bf16.msra.mxu0 %v1036
    %1551 = vmatprep.subr.bf16.mxu0 %v1033
    %1552 = vmatpush1.bf16.msra.mxu0 %v1032
    %1553 = vmatprep.subr.bf16.mxu0 %v1029
    %1554 = vmatpush1.bf16.msra.mxu0 %v1028
    %1555 = vmatprep.subr.bf16.mxu0 %v1025
    %1556 = vmatpush1.bf16.msra.mxu0 %v1024
    %1557 = vmatprep.subr.bf16.mxu0 %v1021
    %1558 = vmatpush1.bf16.msra.mxu0 %v1020
    %1559 = vmatprep.subr.bf16.mxu0 %v1017
    %1560 = vmatpush1.bf16.msra.mxu0 %v1016
    %1561 = vmatprep.subr.bf16.mxu0 %v1013
    %1562 = vmatpush1.bf16.msra.mxu0 %v1012
    %1563 = vmatprep.subr.bf16.mxu0 %v1073
    %1564 = vmatpush2.bf16.msra.mxu0 %v1072
    %1565 = vmatprep.subr.bf16.mxu0 %v1069
    %1566 = vmatpush2.bf16.msra.mxu0 %v1068
    %1567 = vmatprep.subr.bf16.mxu0 %v1065
    %1568 = vmatpush2.bf16.msra.mxu0 %v1064
    %1569 = vmatprep.subr.bf16.mxu0 %v1061
    %1570 = vmatpush2.bf16.msra.mxu0 %v1060
    %1571 = vmatprep.subr.bf16.mxu0 %v1057
    %1572 = vmatpush2.bf16.msra.mxu0 %v1056
    %1573 = vmatprep.subr.bf16.mxu0 %v1053
    %1574 = vmatpush2.bf16.msra.mxu0 %v1052
    %1575 = vmatprep.subr.bf16.mxu0 %v1049
    %1576 = vmatpush2.bf16.msra.mxu0 %v1048
    %1577 = vmatprep.subr.bf16.mxu0 %v1045
    %1578 = vmatpush2.bf16.msra.mxu0 %v1044
    %1579 = vmatprep.mubr.bf16.mxu0 %v348
    %1580 = vmatmul.mubr.bf16.gmra.mxu0 %v347
    %v1581 = vpop.f32.mrf.mxu0
    %v1582 = vadd.f32 %v1541, %v1581
    %v1583 = vpop.f32.mrf.mxu0
    %v1584 = vadd.f32 %v1543, %v1583
    %v1585 = vpop.f32.mrf.mxu0
    %v1586 = vpop.f32.mrf.mxu0
    %1587 = vdwg.mxu0
    %1588 = vmatprep.subr.bf16.mxu0 %v1105
    %1589 = vmatpush1.bf16.msra.mxu0 %v1104
    %1590 = vmatprep.subr.bf16.mxu0 %v1101
    %1591 = vmatpush1.bf16.msra.mxu0 %v1100
    %1592 = vmatprep.subr.bf16.mxu0 %v1097
    %1593 = vmatpush1.bf16.msra.mxu0 %v1096
    %1594 = vmatprep.subr.bf16.mxu0 %v1093
    %1595 = vmatpush1.bf16.msra.mxu0 %v1092
    %1596 = vmatprep.subr.bf16.mxu0 %v1089
    %1597 = vmatpush1.bf16.msra.mxu0 %v1088
    %1598 = vmatprep.subr.bf16.mxu0 %v1085
    %1599 = vmatpush1.bf16.msra.mxu0 %v1084
    %1600 = vmatprep.subr.bf16.mxu0 %v1081
    %1601 = vmatpush1.bf16.msra.mxu0 %v1080
    %1602 = vmatprep.subr.bf16.mxu0 %v1077
    %1603 = vmatpush1.bf16.msra.mxu0 %v1076
    %1604 = vmatprep.subr.bf16.mxu0 %v1137
    %1605 = vmatpush2.bf16.msra.mxu0 %v1136
    %1606 = vmatprep.subr.bf16.mxu0 %v1133
    %1607 = vmatpush2.bf16.msra.mxu0 %v1132
    %1608 = vmatprep.subr.bf16.mxu0 %v1129
    %1609 = vmatpush2.bf16.msra.mxu0 %v1128
    %1610 = vmatprep.subr.bf16.mxu0 %v1125
    %1611 = vmatpush2.bf16.msra.mxu0 %v1124
    %1612 = vmatprep.subr.bf16.mxu0 %v1121
    %1613 = vmatpush2.bf16.msra.mxu0 %v1120
    %1614 = vmatprep.subr.bf16.mxu0 %v1117
    %1615 = vmatpush2.bf16.msra.mxu0 %v1116
    %1616 = vmatprep.subr.bf16.mxu0 %v1113
    %1617 = vmatpush2.bf16.msra.mxu0 %v1112
    %1618 = vmatprep.subr.bf16.mxu0 %v1109
    %1619 = vmatpush2.bf16.msra.mxu0 %v1108
    %1620 = vmatprep.mubr.bf16.mxu0 %v350
    %1621 = vmatmul.mubr.bf16.gmra.mxu0 %v349
    %v1622 = vpop.f32.mrf.mxu0
    %v1623 = vadd.f32 %v1582, %v1622
    %v1624 = vpop.f32.mrf.mxu0
    %v1625 = vadd.f32 %v1584, %v1624
    %v1626 = vpop.f32.mrf.mxu0
    %v1627 = vpop.f32.mrf.mxu0
    %1628 = vdwg.mxu0
    %1629 = vmatprep.subr.bf16.mxu0 0
    %1630 = vmatpush1.bf16.msra.mxu0 0
    %1631 = vmatprep.subr.bf16.mxu0 0
    %1632 = vmatpush1.bf16.msra.mxu0 0
    %1633 = vmatprep.subr.bf16.mxu0 0
    %1634 = vmatpush1.bf16.msra.mxu0 0
    %1635 = vmatprep.subr.bf16.mxu0 0
    %1636 = vmatpush1.bf16.msra.mxu0 0
    %1637 = vmatprep.subr.bf16.mxu0 0
    %1638 = vmatpush1.bf16.msra.mxu0 0
    %1639 = vmatprep.subr.bf16.mxu0 0
    %1640 = vmatpush1.bf16.msra.mxu0 0
    %1641 = vmatprep.subr.bf16.mxu0 0
    %1642 = vmatpush1.bf16.msra.mxu0 0
    %1643 = vmatprep.subr.bf16.mxu0 %v1141
    %1644 = vmatpush1.bf16.msra.mxu0 %v1140
    %1645 = vmatprep.subr.bf16.mxu0 0
    %1646 = vmatpush2.bf16.msra.mxu0 0
    %1647 = vmatprep.subr.bf16.mxu0 0
    %1648 = vmatpush2.bf16.msra.mxu0 0
    %1649 = vmatprep.subr.bf16.mxu0 0
    %1650 = vmatpush2.bf16.msra.mxu0 0
    %1651 = vmatprep.subr.bf16.mxu0 0
    %1652 = vmatpush2.bf16.msra.mxu0 0
    %1653 = vmatprep.subr.bf16.mxu0 0
    %1654 = vmatpush2.bf16.msra.mxu0 0
    %1655 = vmatprep.subr.bf16.mxu0 0
    %1656 = vmatpush2.bf16.msra.mxu0 0
    %1657 = vmatprep.subr.bf16.mxu0 0
    %1658 = vmatpush2.bf16.msra.mxu0 0
    %1659 = vmatprep.subr.bf16.mxu0 0
    %1660 = vmatpush2.bf16.msra.mxu0 0
    %1661 = vmatprep.mubr.bf16.mxu0 0
    %1662 = vmatmul.mubr.bf16.gmra.mxu0 %v1340
    %v1663 = vpop.f32.mrf.mxu0
    %v1664 = vadd.f32 %v1623, %v1663
    %v1665 = vpop.f32.mrf.mxu0
    %v1666 = vadd.f32 %v1625, %v1665
    %v1667 = vpop.f32.mrf.mxu0
    %v1668 = vpop.f32.mrf.mxu0
    %1669 = vdwg.mxu0
    %v1670 = vmax.f32 %v1500, 0.0
    %v1671 = vmax.f32 %v1502, 0.0
    %v1672 = vmax.f32 %v1664, 0.0
    %v1673 = vmax.f32 %v1666, 0.0
    %v1674 = vpack.c.bf16 %v1670, %v1670
    %v1675 = vpack.c.bf16 %v1671, %v1671
    %v1676 = vpack.c.bf16 %v1672, %v1672
    %v1677 = vpack.c.bf16 %v1673, %v1673
    %v1678 = vld [vmem:[#allocation8] sm:$0xff]
    %v1679 = vld [vmem:[#allocation8 + $0x8] sm:$0xff]
    %v1680 = vld [vmem:[#allocation8 + $0x10] sm:$0xff]
    %v1681 = vld [vmem:[#allocation8 + $0x18] sm:$0xff]
    %v1682 = vld [vmem:[#allocation8 + $0x20] sm:$0xff]
    %v1683 = vld [vmem:[#allocation8 + $0x28] sm:$0xff]
    %v1684 = vld [vmem:[#allocation8 + $0x30] sm:$0xff]
    %v1685 = vld [vmem:[#allocation8 + $0x38] sm:$0xff]
    %v1686 = vld [vmem:[#allocation8 + $0x40] sm:$0xff]
    %v1687 = vld [vmem:[#allocation8 + $0x48] sm:$0xff]
    %v1688 = vld [vmem:[#allocation8 + $0x50] sm:$0xff]
    %v1689 = vld [vmem:[#allocation8 + $0x58] sm:$0xff]
    %v1690 = vld [vmem:[#allocation8 + $0x60] sm:$0xff]
    %v1691 = vld [vmem:[#allocation8 + $0x68] sm:$0xff]
    %v1692 = vld [vmem:[#allocation8 + $0x70] sm:$0xff]
    %v1693 = vld [vmem:[#allocation8 + $0x78] sm:$0xff]
    %v1694 = vld [vmem:[#allocation8 + $0x80] sm:$0xff]
    %v1695 = vld [vmem:[#allocation8 + $0x88] sm:$0xff]
    %v1696 = vld [vmem:[#allocation8 + $0x90] sm:$0xff]
    %v1697 = vld [vmem:[#allocation8 + $0x98] sm:$0xff]
    %v1698 = vld [vmem:[#allocation8 + $0xa0] sm:$0xff]
    %v1699 = vld [vmem:[#allocation8 + $0xa8] sm:$0xff]
    %v1700 = vld [vmem:[#allocation8 + $0xb0] sm:$0xff]
    %v1701 = vld [vmem:[#allocation8 + $0xb8] sm:$0xff]
    %v1702 = vld [vmem:[#allocation8 + $0xc0] sm:$0xff]
    %v1703 = vld [vmem:[#allocation8 + $0xc8] sm:$0xff]
    %v1704 = vld [vmem:[#allocation8 + $0xd0] sm:$0xff]
    %v1705 = vld [vmem:[#allocation8 + $0xd8] sm:$0xff]
    %v1706 = vld [vmem:[#allocation8 + $0xe0] sm:$0xff]
    %v1707 = vld [vmem:[#allocation8 + $0xe8] sm:$0xff]
    %v1708 = vld [vmem:[#allocation8 + $0xf0] sm:$0xff]
    %v1709 = vld [vmem:[#allocation8 + $0xf8] sm:$0xff]
    %v1710 = vld [vmem:[#allocation8 + $0x100] sm:$0xff]
    %v1711 = vld [vmem:[#allocation8 + $0x108] sm:$0xff]
    %v1712 = vld [vmem:[#allocation8 + $0x110] sm:$0xff]
    %v1713 = vld [vmem:[#allocation8 + $0x118] sm:$0xff]
    %v1714 = vld [vmem:[#allocation8 + $0x120] sm:$0xff]
    %v1715 = vld [vmem:[#allocation8 + $0x128] sm:$0xff]
    %v1716 = vld [vmem:[#allocation8 + $0x130] sm:$0xff]
    %v1717 = vld [vmem:[#allocation8 + $0x138] sm:$0xff]
    %v1718 = vld [vmem:[#allocation8 + $0x140] sm:$0xff]
    %v1719 = vld [vmem:[#allocation8 + $0x148] sm:$0xff]
    %v1720 = vld [vmem:[#allocation8 + $0x150] sm:$0xff]
    %v1721 = vld [vmem:[#allocation8 + $0x158] sm:$0xff]
    %v1722 = vld [vmem:[#allocation8 + $0x160] sm:$0xff]
    %v1723 = vld [vmem:[#allocation8 + $0x168] sm:$0xff]
    %v1724 = vld [vmem:[#allocation8 + $0x170] sm:$0xff]
    %v1725 = vld [vmem:[#allocation8 + $0x178] sm:$0xff]
    %v1726 = vld [vmem:[#allocation8 + $0x180] sm:$0xff]
    %v1727 = vld [vmem:[#allocation8 + $0x188] sm:$0xff]
    %v1728 = vld [vmem:[#allocation8 + $0x190] sm:$0xff]
    %v1729 = vld [vmem:[#allocation8 + $0x198] sm:$0xff]
    %v1730 = vld [vmem:[#allocation8 + $0x1a0] sm:$0xff]
    %v1731 = vld [vmem:[#allocation8 + $0x1a8] sm:$0xff]
    %v1732 = vld [vmem:[#allocation8 + $0x1b0] sm:$0xff]
    %v1733 = vld [vmem:[#allocation8 + $0x1b8] sm:$0xff]
    %v1734 = vld [vmem:[#allocation8 + $0x1c0] sm:$0xff]
    %v1735 = vld [vmem:[#allocation8 + $0x1c8] sm:$0xff]
    %v1736 = vld [vmem:[#allocation8 + $0x1d0] sm:$0xff]
    %v1737 = vld [vmem:[#allocation8 + $0x1d8] sm:$0xff]
    %v1738 = vld [vmem:[#allocation8 + $0x1e0] sm:$0xff]
    %v1739 = vld [vmem:[#allocation8 + $0x1e8] sm:$0xff]
    %v1740 = vld [vmem:[#allocation8 + $0x1f0] sm:$0xff]
    %v1741 = vld [vmem:[#allocation8 + $0x1f8] sm:$0xff]
    %v1742 = vld [vmem:[%s4] sm:$0x3]
    %v1744 = vlaneseq
    %v1745 = vshrl.u32 %v1744, 7
    %v1746 = vsub.s32 0, %v1745
    %v1747 = vrot.slane %v1742, %v1746
    %v1748 = vlaneseq
    %v1749 = vshrl.u32 %v1748, 7
    %v1750 = vsub.s32 1, %v1749
    %v1751 = vrot.slane %v1742, %v1750
    %v1818 = vunpack.c.l.b16 %v1678
    %v1819 = vunpack.c.h.b16 %v1678
    %v1820 = vunpack.c.l.b16 %v1679
    %v1821 = vunpack.c.h.b16 %v1679
    %v1822 = vunpack.c.l.b16 %v1680
    %v1823 = vunpack.c.h.b16 %v1680
    %v1824 = vunpack.c.l.b16 %v1681
    %v1825 = vunpack.c.h.b16 %v1681
    %v1826 = vunpack.c.l.b16 %v1682
    %v1827 = vunpack.c.h.b16 %v1682
    %v1828 = vunpack.c.l.b16 %v1683
    %v1829 = vunpack.c.h.b16 %v1683
    %v1830 = vunpack.c.l.b16 %v1684
    %v1831 = vunpack.c.h.b16 %v1684
    %v1832 = vunpack.c.l.b16 %v1685
    %v1833 = vunpack.c.h.b16 %v1685
    %v1834 = vunpack.c.l.b16 %v1686
    %v1835 = vunpack.c.h.b16 %v1686
    %v1836 = vunpack.c.l.b16 %v1687
    %v1837 = vunpack.c.h.b16 %v1687
    %v1838 = vunpack.c.l.b16 %v1688
    %v1839 = vunpack.c.h.b16 %v1688
    %v1840 = vunpack.c.l.b16 %v1689
    %v1841 = vunpack.c.h.b16 %v1689
    %v1842 = vunpack.c.l.b16 %v1690
    %v1843 = vunpack.c.h.b16 %v1690
    %v1844 = vunpack.c.l.b16 %v1691
    %v1845 = vunpack.c.h.b16 %v1691
    %v1846 = vunpack.c.l.b16 %v1692
    %v1847 = vunpack.c.h.b16 %v1692
    %v1848 = vunpack.c.l.b16 %v1693
    %v1849 = vunpack.c.h.b16 %v1693
    %v1850 = vunpack.c.l.b16 %v1694
    %v1851 = vunpack.c.h.b16 %v1694
    %v1852 = vunpack.c.l.b16 %v1695
    %v1853 = vunpack.c.h.b16 %v1695
    %v1854 = vunpack.c.l.b16 %v1696
    %v1855 = vunpack.c.h.b16 %v1696
    %v1856 = vunpack.c.l.b16 %v1697
    %v1857 = vunpack.c.h.b16 %v1697
    %v1858 = vunpack.c.l.b16 %v1698
    %v1859 = vunpack.c.h.b16 %v1698
    %v1860 = vunpack.c.l.b16 %v1699
    %v1861 = vunpack.c.h.b16 %v1699
    %v1862 = vunpack.c.l.b16 %v1700
    %v1863 = vunpack.c.h.b16 %v1700
    %v1864 = vunpack.c.l.b16 %v1701
    %v1865 = vunpack.c.h.b16 %v1701
    %v1866 = vunpack.c.l.b16 %v1702
    %v1867 = vunpack.c.h.b16 %v1702
    %v1868 = vunpack.c.l.b16 %v1703
    %v1869 = vunpack.c.h.b16 %v1703
    %v1870 = vunpack.c.l.b16 %v1704
    %v1871 = vunpack.c.h.b16 %v1704
    %v1872 = vunpack.c.l.b16 %v1705
    %v1873 = vunpack.c.h.b16 %v1705
    %v1874 = vunpack.c.l.b16 %v1706
    %v1875 = vunpack.c.h.b16 %v1706
    %v1876 = vunpack.c.l.b16 %v1707
    %v1877 = vunpack.c.h.b16 %v1707
    %v1878 = vunpack.c.l.b16 %v1708
    %v1879 = vunpack.c.h.b16 %v1708
    %v1880 = vunpack.c.l.b16 %v1709
    %v1881 = vunpack.c.h.b16 %v1709
    %v1882 = vunpack.c.l.b16 %v1710
    %v1883 = vunpack.c.h.b16 %v1710
    %v1884 = vunpack.c.l.b16 %v1711
    %v1885 = vunpack.c.h.b16 %v1711
    %v1886 = vunpack.c.l.b16 %v1712
    %v1887 = vunpack.c.h.b16 %v1712
    %v1888 = vunpack.c.l.b16 %v1713
    %v1889 = vunpack.c.h.b16 %v1713
    %v1890 = vunpack.c.l.b16 %v1714
    %v1891 = vunpack.c.h.b16 %v1714
    %v1892 = vunpack.c.l.b16 %v1715
    %v1893 = vunpack.c.h.b16 %v1715
    %v1894 = vunpack.c.l.b16 %v1716
    %v1895 = vunpack.c.h.b16 %v1716
    %v1896 = vunpack.c.l.b16 %v1717
    %v1897 = vunpack.c.h.b16 %v1717
    %v1898 = vunpack.c.l.b16 %v1718
    %v1899 = vunpack.c.h.b16 %v1718
    %v1900 = vunpack.c.l.b16 %v1719
    %v1901 = vunpack.c.h.b16 %v1719
    %v1902 = vunpack.c.l.b16 %v1720
    %v1903 = vunpack.c.h.b16 %v1720
    %v1904 = vunpack.c.l.b16 %v1721
    %v1905 = vunpack.c.h.b16 %v1721
    %v1906 = vunpack.c.l.b16 %v1722
    %v1907 = vunpack.c.h.b16 %v1722
    %v1908 = vunpack.c.l.b16 %v1723
    %v1909 = vunpack.c.h.b16 %v1723
    %v1910 = vunpack.c.l.b16 %v1724
    %v1911 = vunpack.c.h.b16 %v1724
    %v1912 = vunpack.c.l.b16 %v1725
    %v1913 = vunpack.c.h.b16 %v1725
    %v1914 = vunpack.c.l.b16 %v1726
    %v1915 = vunpack.c.h.b16 %v1726
    %v1916 = vunpack.c.l.b16 %v1727
    %v1917 = vunpack.c.h.b16 %v1727
    %v1918 = vunpack.c.l.b16 %v1728
    %v1919 = vunpack.c.h.b16 %v1728
    %v1920 = vunpack.c.l.b16 %v1729
    %v1921 = vunpack.c.h.b16 %v1729
    %v1922 = vunpack.c.l.b16 %v1730
    %v1923 = vunpack.c.h.b16 %v1730
    %v1924 = vunpack.c.l.b16 %v1731
    %v1925 = vunpack.c.h.b16 %v1731
    %v1926 = vunpack.c.l.b16 %v1732
    %v1927 = vunpack.c.h.b16 %v1732
    %v1928 = vunpack.c.l.b16 %v1733
    %v1929 = vunpack.c.h.b16 %v1733
    %v1930 = vunpack.c.l.b16 %v1734
    %v1931 = vunpack.c.h.b16 %v1734
    %v1932 = vunpack.c.l.b16 %v1735
    %v1933 = vunpack.c.h.b16 %v1735
    %v1934 = vunpack.c.l.b16 %v1736
    %v1935 = vunpack.c.h.b16 %v1736
    %v1936 = vunpack.c.l.b16 %v1737
    %v1937 = vunpack.c.h.b16 %v1737
    %v1938 = vunpack.c.l.b16 %v1738
    %v1939 = vunpack.c.h.b16 %v1738
    %v1940 = vunpack.c.l.b16 %v1739
    %v1941 = vunpack.c.h.b16 %v1739
    %v1942 = vunpack.c.l.b16 %v1740
    %v1943 = vunpack.c.h.b16 %v1740
    %v1944 = vunpack.c.l.b16 %v1741
    %v1945 = vunpack.c.h.b16 %v1741
    %v1946 = vpack.c.b16 %v1820, %v1818
    %v1947 = vpack.c.b16 %v1821, %v1819
    %v1948 = vpack.c.b16 %v1824, %v1822
    %v1949 = vpack.c.b16 %v1825, %v1823
    %v1950 = vpack.c.b16 %v1828, %v1826
    %v1951 = vpack.c.b16 %v1829, %v1827
    %v1952 = vpack.c.b16 %v1832, %v1830
    %v1953 = vpack.c.b16 %v1833, %v1831
    %v1954 = vpack.c.b16 %v1836, %v1834
    %v1955 = vpack.c.b16 %v1837, %v1835
    %v1956 = vpack.c.b16 %v1840, %v1838
    %v1957 = vpack.c.b16 %v1841, %v1839
    %v1958 = vpack.c.b16 %v1844, %v1842
    %v1959 = vpack.c.b16 %v1845, %v1843
    %v1960 = vpack.c.b16 %v1848, %v1846
    %v1961 = vpack.c.b16 %v1849, %v1847
    %v1962 = vpack.c.b16 %v1852, %v1850
    %v1963 = vpack.c.b16 %v1853, %v1851
    %v1964 = vpack.c.b16 %v1856, %v1854
    %v1965 = vpack.c.b16 %v1857, %v1855
    %v1966 = vpack.c.b16 %v1860, %v1858
    %v1967 = vpack.c.b16 %v1861, %v1859
    %v1968 = vpack.c.b16 %v1864, %v1862
    %v1969 = vpack.c.b16 %v1865, %v1863
    %v1970 = vpack.c.b16 %v1868, %v1866
    %v1971 = vpack.c.b16 %v1869, %v1867
    %v1972 = vpack.c.b16 %v1872, %v1870
    %v1973 = vpack.c.b16 %v1873, %v1871
    %v1974 = vpack.c.b16 %v1876, %v1874
    %v1975 = vpack.c.b16 %v1877, %v1875
    %v1976 = vpack.c.b16 %v1880, %v1878
    %v1977 = vpack.c.b16 %v1881, %v1879
    %v1978 = vpack.c.b16 %v1884, %v1882
    %v1979 = vpack.c.b16 %v1885, %v1883
    %v1980 = vpack.c.b16 %v1888, %v1886
    %v1981 = vpack.c.b16 %v1889, %v1887
    %v1982 = vpack.c.b16 %v1892, %v1890
    %v1983 = vpack.c.b16 %v1893, %v1891
    %v1984 = vpack.c.b16 %v1896, %v1894
    %v1985 = vpack.c.b16 %v1897, %v1895
    %v1986 = vpack.c.b16 %v1900, %v1898
    %v1987 = vpack.c.b16 %v1901, %v1899
    %v1988 = vpack.c.b16 %v1904, %v1902
    %v1989 = vpack.c.b16 %v1905, %v1903
    %v1990 = vpack.c.b16 %v1908, %v1906
    %v1991 = vpack.c.b16 %v1909, %v1907
    %v1992 = vpack.c.b16 %v1912, %v1910
    %v1993 = vpack.c.b16 %v1913, %v1911
    %v1994 = vpack.c.b16 %v1916, %v1914
    %v1995 = vpack.c.b16 %v1917, %v1915
    %v1996 = vpack.c.b16 %v1920, %v1918
    %v1997 = vpack.c.b16 %v1921, %v1919
    %v1998 = vpack.c.b16 %v1924, %v1922
    %v1999 = vpack.c.b16 %v1925, %v1923
    %v2000 = vpack.c.b16 %v1928, %v1926
    %v2001 = vpack.c.b16 %v1929, %v1927
    %v2002 = vpack.c.b16 %v1932, %v1930
    %v2003 = vpack.c.b16 %v1933, %v1931
    %v2004 = vpack.c.b16 %v1936, %v1934
    %v2005 = vpack.c.b16 %v1937, %v1935
    %v2006 = vpack.c.b16 %v1940, %v1938
    %v2007 = vpack.c.b16 %v1941, %v1939
    %v2008 = vpack.c.b16 %v1944, %v1942
    %v2009 = vpack.c.b16 %v1945, %v1943
    %2074 = vmatprep.subr.bf16.mxu0 %v1961
    %2075 = vmatpush1.bf16.msra.mxu0 %v1960
    %2076 = vmatprep.subr.bf16.mxu0 %v1959
    %2077 = vmatpush1.bf16.msra.mxu0 %v1958
    %2078 = vmatprep.subr.bf16.mxu0 %v1957
    %2079 = vmatpush1.bf16.msra.mxu0 %v1956
    %2080 = vmatprep.subr.bf16.mxu0 %v1955
    %2081 = vmatpush1.bf16.msra.mxu0 %v1954
    %2082 = vmatprep.subr.bf16.mxu0 %v1953
    %2083 = vmatpush1.bf16.msra.mxu0 %v1952
    %2084 = vmatprep.subr.bf16.mxu0 %v1951
    %2085 = vmatpush1.bf16.msra.mxu0 %v1950
    %2086 = vmatprep.subr.bf16.mxu0 %v1949
    %2087 = vmatpush1.bf16.msra.mxu0 %v1948
    %2088 = vmatprep.subr.bf16.mxu0 %v1947
    %2089 = vmatpush1.bf16.msra.mxu0 %v1946
    %2090 = vmatprep.subr.bf16.mxu0 %v1977
    %2091 = vmatpush2.bf16.msra.mxu0 %v1976
    %2092 = vmatprep.subr.bf16.mxu0 %v1975
    %2093 = vmatpush2.bf16.msra.mxu0 %v1974
    %2094 = vmatprep.subr.bf16.mxu0 %v1973
    %2095 = vmatpush2.bf16.msra.mxu0 %v1972
    %2096 = vmatprep.subr.bf16.mxu0 %v1971
    %2097 = vmatpush2.bf16.msra.mxu0 %v1970
    %2098 = vmatprep.subr.bf16.mxu0 %v1969
    %2099 = vmatpush2.bf16.msra.mxu0 %v1968
    %2100 = vmatprep.subr.bf16.mxu0 %v1967
    %2101 = vmatpush2.bf16.msra.mxu0 %v1966
    %2102 = vmatprep.subr.bf16.mxu0 %v1965
    %2103 = vmatpush2.bf16.msra.mxu0 %v1964
    %2104 = vmatprep.subr.bf16.mxu0 %v1963
    %2105 = vmatpush2.bf16.msra.mxu0 %v1962
    %2106 = vmatprep.mubr.bf16.mxu0 %v1675
    %2107 = vmatmul.mubr.bf16.gmra.mxu0 %v1674
    %v2108 = vpop.f32.mrf.mxu0
    %v2109 = vadd.f32 %v1747, %v2108
    %v2110 = vpop.f32.mrf.mxu0
    %v2111 = vadd.f32 %v1751, %v2110
    %v2112 = vpop.f32.mrf.mxu0
    %v2113 = vpop.f32.mrf.mxu0
    %2114 = vdwg.mxu0
    %2115 = vmatprep.subr.bf16.mxu0 %v1993
    %2116 = vmatpush1.bf16.msra.mxu0 %v1992
    %2117 = vmatprep.subr.bf16.mxu0 %v1991
    %2118 = vmatpush1.bf16.msra.mxu0 %v1990
    %2119 = vmatprep.subr.bf16.mxu0 %v1989
    %2120 = vmatpush1.bf16.msra.mxu0 %v1988
    %2121 = vmatprep.subr.bf16.mxu0 %v1987
    %2122 = vmatpush1.bf16.msra.mxu0 %v1986
    %2123 = vmatprep.subr.bf16.mxu0 %v1985
    %2124 = vmatpush1.bf16.msra.mxu0 %v1984
    %2125 = vmatprep.subr.bf16.mxu0 %v1983
    %2126 = vmatpush1.bf16.msra.mxu0 %v1982
    %2127 = vmatprep.subr.bf16.mxu0 %v1981
    %2128 = vmatpush1.bf16.msra.mxu0 %v1980
    %2129 = vmatprep.subr.bf16.mxu0 %v1979
    %2130 = vmatpush1.bf16.msra.mxu0 %v1978
    %2131 = vmatprep.subr.bf16.mxu0 %v2009
    %2132 = vmatpush2.bf16.msra.mxu0 %v2008
    %2133 = vmatprep.subr.bf16.mxu0 %v2007
    %2134 = vmatpush2.bf16.msra.mxu0 %v2006
    %2135 = vmatprep.subr.bf16.mxu0 %v2005
    %2136 = vmatpush2.bf16.msra.mxu0 %v2004
    %2137 = vmatprep.subr.bf16.mxu0 %v2003
    %2138 = vmatpush2.bf16.msra.mxu0 %v2002
    %2139 = vmatprep.subr.bf16.mxu0 %v2001
    %2140 = vmatpush2.bf16.msra.mxu0 %v2000
    %2141 = vmatprep.subr.bf16.mxu0 %v1999
    %2142 = vmatpush2.bf16.msra.mxu0 %v1998
    %2143 = vmatprep.subr.bf16.mxu0 %v1997
    %2144 = vmatpush2.bf16.msra.mxu0 %v1996
    %2145 = vmatprep.subr.bf16.mxu0 %v1995
    %2146 = vmatpush2.bf16.msra.mxu0 %v1994
    %2147 = vmatprep.mubr.bf16.mxu0 %v1677
    %2148 = vmatmul.mubr.bf16.gmra.mxu0 %v1676
    %v2149 = vpop.f32.mrf.mxu0
    %v2150 = vadd.f32 %v2109, %v2149
    %v2151 = vpop.f32.mrf.mxu0
    %v2152 = vadd.f32 %v2111, %v2151
    %v2153 = vpop.f32.mrf.mxu0
    %v2154 = vpop.f32.mrf.mxu0
    %2155 = vdwg.mxu0
    %v2156 = vmax.f32 %v2150, 0.0
    %v2157 = vmax.f32 %v2152, 0.0
    %v2158 = vpack.c.bf16 %v2156, %v2156
    %v2159 = vpack.c.bf16 %v2157, %v2157
    %v2160 = vld [vmem:[#allocation10] sm:$0xf]
    %v2161 = vld [vmem:[#allocation10 + $0x4] sm:$0xf]
    %v2162 = vld [vmem:[#allocation10 + $0x8] sm:$0xf]
    %v2163 = vld [vmem:[#allocation10 + $0xc] sm:$0xf]
    %v2164 = vld [vmem:[#allocation10 + $0x10] sm:$0xf]
    %v2165 = vld [vmem:[#allocation10 + $0x14] sm:$0xf]
    %v2166 = vld [vmem:[#allocation10 + $0x18] sm:$0xf]
    %v2167 = vld [vmem:[#allocation10 + $0x1c] sm:$0xf]
    %v2168 = vld [vmem:[#allocation10 + $0x20] sm:$0xf]
    %v2169 = vld [vmem:[#allocation10 + $0x24] sm:$0xf]
    %v2170 = vld [vmem:[#allocation10 + $0x28] sm:$0xf]
    %v2171 = vld [vmem:[#allocation10 + $0x2c] sm:$0xf]
    %v2172 = vld [vmem:[#allocation10 + $0x30] sm:$0xf]
    %v2173 = vld [vmem:[#allocation10 + $0x34] sm:$0xf]
    %v2174 = vld [vmem:[#allocation10 + $0x38] sm:$0xf]
    %v2175 = vld [vmem:[#allocation10 + $0x3c] sm:$0xf]
    %v2176 = vld [vmem:[#allocation10 + $0x40] sm:$0xf]
    %v2177 = vld [vmem:[#allocation10 + $0x44] sm:$0xf]
    %v2178 = vld [vmem:[#allocation10 + $0x48] sm:$0xf]
    %v2179 = vld [vmem:[#allocation10 + $0x4c] sm:$0xf]
    %v2180 = vld [vmem:[#allocation10 + $0x50] sm:$0xf]
    %v2181 = vld [vmem:[#allocation10 + $0x54] sm:$0xf]
    %v2182 = vld [vmem:[#allocation10 + $0x58] sm:$0xf]
    %v2183 = vld [vmem:[#allocation10 + $0x5c] sm:$0xf]
    %v2184 = vld [vmem:[#allocation10 + $0x60] sm:$0xf]
    %v2185 = vld [vmem:[#allocation10 + $0x64] sm:$0xf]
    %v2186 = vld [vmem:[#allocation10 + $0x68] sm:$0xf]
    %v2187 = vld [vmem:[#allocation10 + $0x6c] sm:$0xf]
    %v2188 = vld [vmem:[#allocation10 + $0x70] sm:$0xf]
    %v2189 = vld [vmem:[#allocation10 + $0x74] sm:$0xf]
    %v2190 = vld [vmem:[#allocation10 + $0x78] sm:$0xf]
    %v2191 = vld [vmem:[#allocation10 + $0x7c] sm:$0xf]
    %v2192 = vld [vmem:[%s6] sm:$0x1]
    %v2194 = vlaneseq
    %v2195 = vshrl.u32 %v2194, 7
    %v2196 = vsub.s32 0, %v2195
    %v2197 = vrot.slane %v2192, %v2196
    %v2231 = vunpack.c.l.b16 %v2160
    %v2232 = vunpack.c.l.b16 %v2161
    %v2233 = vunpack.c.l.b16 %v2162
    %v2234 = vunpack.c.l.b16 %v2163
    %v2235 = vunpack.c.l.b16 %v2164
    %v2236 = vunpack.c.l.b16 %v2165
    %v2237 = vunpack.c.l.b16 %v2166
    %v2238 = vunpack.c.l.b16 %v2167
    %v2239 = vunpack.c.l.b16 %v2168
    %v2240 = vunpack.c.l.b16 %v2169
    %v2241 = vunpack.c.l.b16 %v2170
    %v2242 = vunpack.c.l.b16 %v2171
    %v2243 = vunpack.c.l.b16 %v2172
    %v2244 = vunpack.c.l.b16 %v2173
    %v2245 = vunpack.c.l.b16 %v2174
    %v2246 = vunpack.c.l.b16 %v2175
    %v2247 = vunpack.c.l.b16 %v2176
    %v2248 = vunpack.c.l.b16 %v2177
    %v2249 = vunpack.c.l.b16 %v2178
    %v2250 = vunpack.c.l.b16 %v2179
    %v2251 = vunpack.c.l.b16 %v2180
    %v2252 = vunpack.c.l.b16 %v2181
    %v2253 = vunpack.c.l.b16 %v2182
    %v2254 = vunpack.c.l.b16 %v2183
    %v2255 = vunpack.c.l.b16 %v2184
    %v2256 = vunpack.c.l.b16 %v2185
    %v2257 = vunpack.c.l.b16 %v2186
    %v2258 = vunpack.c.l.b16 %v2187
    %v2259 = vunpack.c.l.b16 %v2188
    %v2260 = vunpack.c.l.b16 %v2189
    %v2261 = vunpack.c.l.b16 %v2190
    %v2262 = vunpack.c.l.b16 %v2191
    %v2263 = vpack.c.b16 %v2232, %v2231
    %v2264 = vpack.c.b16 %v2234, %v2233
    %v2265 = vpack.c.b16 %v2236, %v2235
    %v2266 = vpack.c.b16 %v2238, %v2237
    %v2267 = vpack.c.b16 %v2240, %v2239
    %v2268 = vpack.c.b16 %v2242, %v2241
    %v2269 = vpack.c.b16 %v2244, %v2243
    %v2270 = vpack.c.b16 %v2246, %v2245
    %v2271 = vpack.c.b16 %v2248, %v2247
    %v2272 = vpack.c.b16 %v2250, %v2249
    %v2273 = vpack.c.b16 %v2252, %v2251
    %v2274 = vpack.c.b16 %v2254, %v2253
    %v2275 = vpack.c.b16 %v2256, %v2255
    %v2276 = vpack.c.b16 %v2258, %v2257
    %v2277 = vpack.c.b16 %v2260, %v2259
    %v2278 = vpack.c.b16 %v2262, %v2261
    %2295 = vmatprep.subr.bf16.mxu0 0
    %2296 = vmatpush1.bf16.msra.mxu0 %v2270
    %2297 = vmatprep.subr.bf16.mxu0 0
    %2298 = vmatpush1.bf16.msra.mxu0 %v2269
    %2299 = vmatprep.subr.bf16.mxu0 0
    %2300 = vmatpush1.bf16.msra.mxu0 %v2268
    %2301 = vmatprep.subr.bf16.mxu0 0
    %2302 = vmatpush1.bf16.msra.mxu0 %v2267
    %2303 = vmatprep.subr.bf16.mxu0 0
    %2304 = vmatpush1.bf16.msra.mxu0 %v2266
    %2305 = vmatprep.subr.bf16.mxu0 0
    %2306 = vmatpush1.bf16.msra.mxu0 %v2265
    %2307 = vmatprep.subr.bf16.mxu0 0
    %2308 = vmatpush1.bf16.msra.mxu0 %v2264
    %2309 = vmatprep.subr.bf16.mxu0 0
    %2310 = vmatpush1.bf16.msra.mxu0 %v2263
    %2311 = vmatprep.subr.bf16.mxu0 0
    %2312 = vmatpush2.bf16.msra.mxu0 %v2278
    %2313 = vmatprep.subr.bf16.mxu0 0
    %2314 = vmatpush2.bf16.msra.mxu0 %v2277
    %2315 = vmatprep.subr.bf16.mxu0 0
    %2316 = vmatpush2.bf16.msra.mxu0 %v2276
    %2317 = vmatprep.subr.bf16.mxu0 0
    %2318 = vmatpush2.bf16.msra.mxu0 %v2275
    %2319 = vmatprep.subr.bf16.mxu0 0
    %2320 = vmatpush2.bf16.msra.mxu0 %v2274
    %2321 = vmatprep.subr.bf16.mxu0 0
    %2322 = vmatpush2.bf16.msra.mxu0 %v2273
    %2323 = vmatprep.subr.bf16.mxu0 0
    %2324 = vmatpush2.bf16.msra.mxu0 %v2272
    %2325 = vmatprep.subr.bf16.mxu0 0
    %2326 = vmatpush2.bf16.msra.mxu0 %v2271
    %2327 = vmatprep.mubr.bf16.mxu0 %v2159
    %2328 = vmatmul.mubr.bf16.gmra.mxu0 %v2158
    %v2329 = vpop.f32.mrf.mxu0
    %v2330 = vadd.f32 %v2197, %v2329
    %v2331 = vpop.f32.mrf.mxu0
    %v2332 = vpop.f32.mrf.mxu0
    %v2333 = vpop.f32.mrf.mxu0
    %2334 = vdwg.mxu0
    %v2335 = vmax.f32 %v2330, 0.0
    %v2336 = vpack.c.bf16 %v2335, %v2335
    %v2337 = vld [vmem:[#allocation11] sm:$0xf]
    %v2338 = vld [vmem:[#allocation11 + $0x4] sm:$0xf]
    %v2339 = vld [vmem:[#allocation11 + $0x8] sm:$0xf]
    %v2340 = vld [vmem:[#allocation11 + $0xc] sm:$0xf]
    %v2341 = vld [vmem:[#allocation11 + $0x10] sm:$0xf]
    %v2342 = vld [vmem:[#allocation11 + $0x14] sm:$0xf]
    %v2343 = vld [vmem:[#allocation11 + $0x18] sm:$0xf]
    %v2344 = vld [vmem:[#allocation11 + $0x1c] sm:$0xf]
    %v2345 = vld [vmem:[#allocation11 + $0x20] sm:$0xf]
    %v2346 = vld [vmem:[#allocation11 + $0x24] sm:$0xf]
    %v2347 = vld [vmem:[#allocation11 + $0x28] sm:$0xf]
    %v2348 = vld [vmem:[#allocation11 + $0x2c] sm:$0xf]
    %v2349 = vld [vmem:[#allocation11 + $0x30] sm:$0xf]
    %v2350 = vld [vmem:[#allocation11 + $0x34] sm:$0xf]
    %v2351 = vld [vmem:[#allocation11 + $0x38] sm:$0xf]
    %v2352 = vld [vmem:[#allocation11 + $0x3c] sm:$0xf]
    %v2353 = vld [vmem:[%s8] sm:$0x1]
    %v2355 = vlaneseq
    %v2356 = vshrl.u32 %v2355, 7
    %v2357 = vsub.s32 0, %v2356
    %v2358 = vrot.slane %v2353, %v2357
    %v2376 = vunpack.c.l.b16 %v2337
    %v2377 = vunpack.c.l.b16 %v2338
    %v2378 = vunpack.c.l.b16 %v2339
    %v2379 = vunpack.c.l.b16 %v2340
    %v2380 = vunpack.c.l.b16 %v2341
    %v2381 = vunpack.c.l.b16 %v2342
    %v2382 = vunpack.c.l.b16 %v2343
    %v2383 = vunpack.c.l.b16 %v2344
    %v2384 = vunpack.c.l.b16 %v2345
    %v2385 = vunpack.c.l.b16 %v2346
    %v2386 = vunpack.c.l.b16 %v2347
    %v2387 = vunpack.c.l.b16 %v2348
    %v2388 = vunpack.c.l.b16 %v2349
    %v2389 = vunpack.c.l.b16 %v2350
    %v2390 = vunpack.c.l.b16 %v2351
    %v2391 = vunpack.c.l.b16 %v2352
    %v2392 = vpack.c.b16 %v2377, %v2376
    %v2393 = vpack.c.b16 %v2379, %v2378
    %v2394 = vpack.c.b16 %v2381, %v2380
    %v2395 = vpack.c.b16 %v2383, %v2382
    %v2396 = vpack.c.b16 %v2385, %v2384
    %v2397 = vpack.c.b16 %v2387, %v2386
    %v2398 = vpack.c.b16 %v2389, %v2388
    %v2399 = vpack.c.b16 %v2391, %v2390
    %2408 = vmatprep.subr.bf16.mxu0 0
    %2409 = vmatpush1.bf16.msra.mxu0 %v2399
    %2410 = vmatprep.subr.bf16.mxu0 0
    %2411 = vmatpush1.bf16.msra.mxu0 %v2398
    %2412 = vmatprep.subr.bf16.mxu0 0
    %2413 = vmatpush1.bf16.msra.mxu0 %v2397
    %2414 = vmatprep.subr.bf16.mxu0 0
    %2415 = vmatpush1.bf16.msra.mxu0 %v2396
    %2416 = vmatprep.subr.bf16.mxu0 0
    %2417 = vmatpush1.bf16.msra.mxu0 %v2395
    %2418 = vmatprep.subr.bf16.mxu0 0
    %2419 = vmatpush1.bf16.msra.mxu0 %v2394
    %2420 = vmatprep.subr.bf16.mxu0 0
    %2421 = vmatpush1.bf16.msra.mxu0 %v2393
    %2422 = vmatprep.subr.bf16.mxu0 0
    %2423 = vmatpush1.bf16.msra.mxu0 %v2392
    %2424 = vmatprep.subr.bf16.mxu0 0
    %2425 = vmatpush2.bf16.msra.mxu0 0
    %2426 = vmatprep.subr.bf16.mxu0 0
    %2427 = vmatpush2.bf16.msra.mxu0 0
    %2428 = vmatprep.subr.bf16.mxu0 0
    %2429 = vmatpush2.bf16.msra.mxu0 0
    %2430 = vmatprep.subr.bf16.mxu0 0
    %2431 = vmatpush2.bf16.msra.mxu0 0
    %2432 = vmatprep.subr.bf16.mxu0 0
    %2433 = vmatpush2.bf16.msra.mxu0 0
    %2434 = vmatprep.subr.bf16.mxu0 0
    %2435 = vmatpush2.bf16.msra.mxu0 0
    %2436 = vmatprep.subr.bf16.mxu0 0
    %2437 = vmatpush2.bf16.msra.mxu0 0
    %2438 = vmatprep.subr.bf16.mxu0 0
    %2439 = vmatpush2.bf16.msra.mxu0 0
    %2440 = vmatprep.mubr.bf16.mxu0 0
    %2441 = vmatmul.mubr.bf16.gmra.mxu0 %v2336
    %v2442 = vpop.f32.mrf.mxu0
    %v2443 = vadd.f32 %v2358, %v2442
    %v2444 = vpop.f32.mrf.mxu0
    %v2445 = vpop.f32.mrf.mxu0
    %v2446 = vpop.f32.mrf.mxu0
    %2447 = vdwg.mxu0
    %2448 = vst [vmem:[#allocation13] sm:$0xff] %v2443
    // Predicated region
    $region62: #{custom_model_forward.1} parent=1 // pred_check
      _
    $region63: #{custom_model_forward.1} parent=1 // pred_check_branch
      %2450 = sbr.rel (0) target = $region65
    $region64: #{custom_model_forward.1} parent=1 // pred_region
      %s2452 = ssub.s32 128, 128
      %2453 = vsyncadd [#allocation4], %s2452
      %s2455 = sshll.u32 [#allocation13], 4
      %s2456 = int_to_ptr.vmem [resolvable:$true] %s2455
      %2458 = dma.vmem_to_hbm [thread:$0]  %s2456, 128, %s9, [#allocation4]
    $region65: #{custom_model_forward.1} parent=1 // pred_fallthru
      _
    // Predicated region
    $region66: #{custom_model_forward.1} parent=1 // pred_check
      _
    $region67: #{custom_model_forward.1} parent=1 // pred_check_branch
      %2460 = sbr.rel (0) target = $region69
    $region68: #{custom_model_forward.1} parent=1 // pred_region
      %2461 = dma.done [#allocation4], 128
    $region69: #{custom_model_forward.1} parent=1 // pred_fallthru
      _
    %2462 = vsyncpa [#allocation3], 1
    %2463 = vsyncpa [#allocation6], 1
    %2464 = vsyncpa [#allocation9], 1
    %2465 = vsyncpa [#allocation12], 1
    %2466 = vsyncpa [#allocation4], 1

</llo_original>
